<compile_context>
chip_gen: v7x
topology: tpu7x:2x2x1
jax: 0.10.0
libtpu: 0.0.40
codegen_flags: <defaults>
</compile_context>

<pallas_src>
import functools

import numpy as np
import jax
import jax.numpy as jnp
from jax.experimental import pallas as pl
from jax.experimental.pallas import tpu as pltpu


LANES = 128


def _round_up(x, m):
    return (x + m - 1) // m * m


def _pick_tile_rows(h_out, w_pad, w_out, cin_p, cout_p, stride,
                    budget_bytes=6 * 2**20):
    """Largest divisor of h_out whose per-tile streamed working set fits budget."""
    best = 1
    for th in range(1, h_out + 1):
        if h_out % th:
            continue
        if h_out > 1 and th == h_out:
            continue                                     # keep >=2 tiles (bounds halo padding)
        in_b = 2 * th * stride * w_pad * cin_p * 4       # main + halo input blocks (f32)
        mid_b = th * (w_pad - 2) * cin_p * 4             # stride-1 depthwise accumulator
        out_b = th * w_out * cout_p * 4                  # conv-out tile (f32)
        if in_b + mid_b + out_b <= budget_bytes:
            best = th
    return best


def _dsconv_conv_kernel(xa_ref, xb_ref, wdw_ref, bdw_ref, wpw_ref, bpw_ref,
                        y_ref, stats_ref, *, stride, tile_rows):
    """Depthwise 3x3 + pointwise 1x1 for one (batch, H-tile) block + BN partial stats."""
    s = stride
    th = tile_rows
    halo = 3 - s                                          # extra rows past the main block

    x_lo = xa_ref[...]                                    # (1, th*s,  Wp, Cp)
    x_hi = xb_ref[:, 0:halo, :, :]                        # (1, halo,  Wp, Cp)
    x = jnp.concatenate([x_lo, x_hi], axis=1)             # (1, th*s+halo, Wp, Cp)

    wdw = wdw_ref[...]                                    # (3, 3, Cp)
    wp = x.shape[2]
    cp = x.shape[3]
    w_full = wp - 2                                       # stride-1 conv width

    # ---- depthwise 3x3: per-channel taps on the VPU, f32 accumulation ----
    acc = jnp.zeros((1, th, w_full, cp), jnp.float32)
    for di in range(3):
        for dj in range(3):
            xs = x[:, di:di + (th - 1) * s + 1:s, dj:dj + w_full, :]
            acc = acc + xs * wdw[di, dj].reshape(1, 1, 1, cp)
    if s > 1:
        # subsample W once at the end instead of 9 strided sublane slices.
        acc = acc[:, :, ::s, :]
    acc = acc + bdw_ref[...]                              # (1, Cp) bias broadcast

    w_out = acc.shape[2]

    # ---- pointwise 1x1: bf16 operands into the MXU, f32 accumulate ----
    m = acc.reshape(th * w_out, cp).astype(jnp.bfloat16)
    y = jnp.dot(m, wpw_ref[...], preferred_element_type=jnp.float32)
    y = y + bpw_ref[...]                                  # (1, Cout_p) bias

    y_ref[...] = y.reshape(1, th, w_out, -1)

    # ---- single-pass BatchNorm partial statistics for this tile ----
    ssum = jnp.sum(y, axis=0, keepdims=True)              # (1, Cout_p)
    ssq = jnp.sum(y * y, axis=0, keepdims=True)           # (1, Cout_p)
    stats = jnp.concatenate([ssum, ssq], axis=0)          # (2, Cout_p)
    stats_ref[...] = stats[None, None]                    # (1, 1, 2, Cout_p)


def _dsconv_bn_relu_kernel(y_ref, scale_ref, shift_ref, o_ref):
    z = y_ref[...] * scale_ref[...] + shift_ref[...]
    o_ref[...] = jnp.maximum(z, 0.0).astype(o_ref.dtype)


def init_dsconv_params(key, nin, nout, kernels_per_layer=1):
    assert kernels_per_layer == 1
    assert nout == nin, "reference module's BatchNorm2d(nin) requires nout == nin"
    k1, k2, k3, k4 = jax.random.split(key, 4)
    # depthwise Conv2d(nin, nin, 3, groups=nin): kaiming_normal_ fan_in = 1*3*3
    w_dw = jax.random.normal(k1, (3, 3, nin), jnp.float32) * np.sqrt(2.0 / 9.0)
    b_dw = jax.random.uniform(k2, (1, nin), jnp.float32,
                              -1.0 / np.sqrt(9.0), 1.0 / np.sqrt(9.0))
    # pointwise Conv2d(nin, nout, 1): kaiming_normal_ fan_in = nin
    w_pw = jax.random.normal(k3, (nin, nout), jnp.float32) * np.sqrt(2.0 / nin)
    b_pw = jax.random.uniform(k4, (1, nout), jnp.float32,
                              -1.0 / np.sqrt(nin), 1.0 / np.sqrt(nin))
    gamma = jnp.ones((1, nout), jnp.float32)           # weights_init: fill_(1.0)
    beta = jnp.full((1, nout), 1e-4, jnp.float32)      # weights_init: fill_(0.0001)
    return dict(w_dw=w_dw, b_dw=b_dw, w_pw=w_pw, b_pw=b_pw,
                gamma=gamma, beta=beta)


@functools.partial(jax.jit, static_argnames=("stride", "tile_rows"))
def dsconv_forward(x_nchw, params, stride=1, tile_rows=None, eps=1e-5):
    s = int(stride)
    # NCHW -> NHWC (channels lane-dense).
    # TODO(synk): keep the surrounding model in NHWC end-to-end to drop this
    # transpose (and the matching output transpose) -- each is a full HBM pass.
    x = jnp.transpose(x_nchw, (0, 2, 3, 1)).astype(jnp.float32)
    n, h, w, c = x.shape
    cout = params["w_pw"].shape[1]
    cin_p = _round_up(c, LANES)
    cout_p = _round_up(cout, LANES)
    h_out = (h - 1) // s + 1
    w_out = (w - 1) // s + 1
    w_pad = w + 2

    th = tile_rows if tile_rows is not None else _pick_tile_rows(
        h_out, w_pad, w_out, cin_p, cout_p, s)
    assert h_out % th == 0, "tile_rows must divide the output height"
    n_t = h_out // th
    blk_h = th * s

    # Pad H so that (a) the conv's zero border rows exist and (b) the +1-shifted
    # halo BlockSpec always addresses a fully in-bounds block.
    n_h_blocks = max(n_t + 1, -(-(h + 2) // blk_h))
    h_tot = n_h_blocks * blk_h
    xp = jnp.pad(x, ((0, 0), (1, h_tot - h - 1), (1, 1), (0, cin_p - c)))

    # Zero-pad params to the lane-aligned channel counts (padded channels stay
    # exactly zero through the whole block and are sliced away at the end).
    w_dw = jnp.pad(params["w_dw"], ((0, 0), (0, 0), (0, cin_p - c)))
    b_dw = jnp.pad(params["b_dw"], ((0, 0), (0, cin_p - c)))
    w_pw = jnp.pad(params["w_pw"],
                   ((0, cin_p - c), (0, cout_p - cout))).astype(jnp.bfloat16)
    b_pw = jnp.pad(params["b_pw"], ((0, 0), (0, cout_p - cout)))
    gamma = jnp.pad(params["gamma"], ((0, 0), (0, cout_p - cout)))
    beta = jnp.pad(params["beta"], ((0, 0), (0, cout_p - cout)))

    grid = (n, n_t)
    cparams = pltpu.CompilerParams(
        dimension_semantics=("parallel", "parallel"),  # shard tiles across both TCs on v7x
        vmem_limit_bytes=40 * 2**20,                   # <= ~40 MiB: safe on v7x's 64 MiB VMEM
    )

    # ---- pass 1: conv block + per-tile BN partial stats ----
    conv_kernel = functools.partial(_dsconv_conv_kernel, stride=s, tile_rows=th)
    y, stats = pl.pallas_call(
        conv_kernel,
        grid=grid,
        in_specs=[
            pl.BlockSpec((1, blk_h, w_pad, cin_p), lambda i, t: (i, t, 0, 0)),
            pl.BlockSpec((1, blk_h, w_pad, cin_p), lambda i, t: (i, t + 1, 0, 0)),  # halo rows
            pl.BlockSpec((3, 3, cin_p), lambda i, t: (0, 0, 0)),
            pl.BlockSpec((1, cin_p), lambda i, t: (0, 0)),
            pl.BlockSpec((cin_p, cout_p), lambda i, t: (0, 0)),
            pl.BlockSpec((1, cout_p), lambda i, t: (0, 0)),
        ],
        out_specs=[
            pl.BlockSpec((1, th, w_out, cout_p), lambda i, t: (i, t, 0, 0)),
            pl.BlockSpec((1, 1, 2, cout_p), lambda i, t: (i, t, 0, 0)),
        ],
        out_shape=[
            jax.ShapeDtypeStruct((n, h_out, w_out, cout_p), jnp.float32),
            jax.ShapeDtypeStruct((n, n_t, 2, cout_p), jnp.float32),
        ],
        compiler_params=cparams,
    )(xp, xp, w_dw, b_dw, w_pw, b_pw)

    # ---- global (training-mode, biased) batch statistics (tiny reduction) ----
    count = float(n * h_out * w_out)
    tot = jnp.sum(stats, axis=(0, 1))                     # (2, cout_p)
    mean = tot[0] / count
    var = jnp.maximum(tot[1] / count - mean * mean, 0.0)
    inv = jax.lax.rsqrt(var + eps)
    scale = (gamma[0] * inv).reshape(1, cout_p)
    shift = (beta[0] - mean * gamma[0] * inv).reshape(1, cout_p)

    # ---- pass 2: normalize + ReLU ----
    out = pl.pallas_call(
        _dsconv_bn_relu_kernel,
        grid=grid,
        in_specs=[
            pl.BlockSpec((1, th, w_out, cout_p), lambda i, t: (i, t, 0, 0)),
            pl.BlockSpec((1, cout_p), lambda i, t: (0, 0)),
            pl.BlockSpec((1, cout_p), lambda i, t: (0, 0)),
        ],
        out_specs=pl.BlockSpec((1, th, w_out, cout_p), lambda i, t: (i, t, 0, 0)),
        out_shape=jax.ShapeDtypeStruct((n, h_out, w_out, cout_p), jnp.float32),
        compiler_params=cparams,
    )(y, scale, shift)

    out = out[..., :cout]
    return jnp.transpose(out, (0, 3, 1, 2))               # back to NCHW


def _dsconv_reference(x_nchw, params, stride, eps=1e-5):
    """Pure-JAX (XLA) reference of the PyTorch module's forward pass."""
    c = params["w_dw"].shape[-1]
    rhs = jnp.transpose(params["w_dw"], (2, 0, 1))[:, None, :, :]   # (C,1,3,3)
    y = jax.lax.conv_general_dilated(
        x_nchw, rhs, window_strides=(stride, stride),
        padding=((1, 1), (1, 1)), feature_group_count=c,
        dimension_numbers=("NCHW", "OIHW", "NCHW"))
    y = y + params["b_dw"].reshape(1, c, 1, 1)
    z = jnp.einsum("nchw,cd->ndhw", y, params["w_pw"])
    z = z + params["b_pw"].reshape(1, -1, 1, 1)
    mean = z.mean(axis=(0, 2, 3), keepdims=True)
    var = ((z - mean) ** 2).mean(axis=(0, 2, 3), keepdims=True)
    zn = (z - mean) * jax.lax.rsqrt(var + eps)
    out = params["gamma"].reshape(1, -1, 1, 1) * zn + params["beta"].reshape(1, -1, 1, 1)
    return jnp.maximum(out, 0.0)


if __name__ == "__main__":
    key = jax.random.PRNGKey(0)
    k_x, k_p = jax.random.split(key)

    N, nin, H, W = 2, 4, 16, 16
    nout, stride = 4, 1          # nout must equal nin (see note above)

    x = jax.random.normal(k_x, (N, nin, H, W), jnp.float32)
    params = init_dsconv_params(k_p, nin, nout)

    # tile_rows=8 -> 2 H-tiles per image, exercising the halo + per-tile stats path.
    y = dsconv_forward(x, params, stride=stride, tile_rows=8)
    jax.block_until_ready(y)

    assert y.shape == (N, nout, H // stride, W // stride)
    assert bool(jnp.all(y >= 0.0))               # ReLU output is non-negative

    ref = _dsconv_reference(x, params, stride)
    np.testing.assert_allclose(np.asarray(y), np.asarray(ref), rtol=5e-2, atol=1e-1)

    print("KERNEL_OK")
</pallas_src>

<mosaic_0001>
module attributes {stable_mosaic.version = 11 : i64} {
  func.func @_dsconv_conv_kernel(%arg0: i32, %arg1: i32, %arg2: memref<1x8x18x128xf32, #tpu.memory_space<vmem>>, %arg3: memref<1x8x18x128xf32, #tpu.memory_space<vmem>>, %arg4: memref<3x3x128xf32, #tpu.memory_space<vmem>>, %arg5: memref<1x128xf32, #tpu.memory_space<vmem>>, %arg6: memref<128x128xbf16, #tpu.memory_space<vmem>>, %arg7: memref<1x128xf32, #tpu.memory_space<vmem>>, %arg8: memref<1x8x16x128xf32, #tpu.memory_space<vmem>>, %arg9: memref<1x1x2x128xf32, #tpu.memory_space<vmem>>) attributes {dimension_semantics = [#tpu.dimension_semantics<parallel>, #tpu.dimension_semantics<parallel>], iteration_bounds = array<i64: 2, 2>, scalar_prefetch = 0 : i64, scratch_operands = 0 : i64, tpu.core_type = #tpu.core_type<tc>, window_params = [{transform_indices = @transform_0, window_bounds = array<i64: 1, 8, 18, 128>}, {transform_indices = @transform_1, window_bounds = array<i64: 1, 8, 18, 128>}, {pipeline_mode = #tpu.pipeline_mode<synchronous>, transform_indices = @transform_2, window_bounds = array<i64: 3, 3, 128>}, {pipeline_mode = #tpu.pipeline_mode<synchronous>, transform_indices = @transform_3, window_bounds = array<i64: 1, 128>}, {pipeline_mode = #tpu.pipeline_mode<synchronous>, transform_indices = @transform_4, window_bounds = array<i64: 128, 128>}, {pipeline_mode = #tpu.pipeline_mode<synchronous>, transform_indices = @transform_5, window_bounds = array<i64: 1, 128>}, {transform_indices = @transform_6, window_bounds = array<i64: 1, 8, 16, 128>}, {transform_indices = @transform_7, window_bounds = array<i64: 1, 1, 2, 128>}]} {
    %c0 = arith.constant 0 : index
    %c0_0 = arith.constant 0 : index
    %c0_1 = arith.constant 0 : index
    %c0_2 = arith.constant 0 : index
    %0 = vector.load %arg2[%c0, %c0_0, %c0_1, %c0_2] : memref<1x8x18x128xf32, #tpu.memory_space<vmem>>, vector<1x8x18x128xf32>
    %c0_3 = arith.constant 0 : index
    %c0_4 = arith.constant 0 : index
    %c0_5 = arith.constant 0 : index
    %c0_6 = arith.constant 0 : index
    %1 = vector.load %arg3[%c0_3, %c0_4, %c0_5, %c0_6] : memref<1x8x18x128xf32, #tpu.memory_space<vmem>>, vector<1x2x18x128xf32>
    %2 = tpu.concatenate %0, %1 in 1 : vector<1x8x18x128xf32>, vector<1x2x18x128xf32> -> vector<1x10x18x128xf32>
    %c0_7 = arith.constant 0 : index
    %c0_8 = arith.constant 0 : index
    %c0_9 = arith.constant 0 : index
    %3 = vector.load %arg4[%c0_7, %c0_8, %c0_9] : memref<3x3x128xf32, #tpu.memory_space<vmem>>, vector<3x3x128xf32>
    %cst = arith.constant 0.000000e+00 : f32
    %4 = vector.broadcast %cst : f32 to vector<1x8x16x128xf32>
    %5 = vector.extract_strided_slice %2 {offsets = [0, 0, 0, 0], sizes = [1, 8, 16, 128], strides = [1, 1, 1, 1]} : vector<1x10x18x128xf32> to vector<1x8x16x128xf32>
    %6 = vector.extract_strided_slice %3 {offsets = [0, 0, 0], sizes = [1, 1, 128], strides = [1, 1, 1]} : vector<3x3x128xf32> to vector<1x1x128xf32>
    %7 = vector.shape_cast %6 : vector<1x1x128xf32> to vector<128xf32>
    %8 = vector.shape_cast %7 : vector<128xf32> to vector<1x1x1x128xf32>
    %9 = vector.broadcast %8 : vector<1x1x1x128xf32> to vector<1x8x16x128xf32>
    %10 = arith.mulf %5, %9 : vector<1x8x16x128xf32>
    %11 = arith.addf %4, %10 : vector<1x8x16x128xf32>
    %12 = vector.extract_strided_slice %2 {offsets = [0, 0, 1, 0], sizes = [1, 8, 16, 128], strides = [1, 1, 1, 1]} : vector<1x10x18x128xf32> to vector<1x8x16x128xf32>
    %13 = vector.extract_strided_slice %3 {offsets = [0, 1, 0], sizes = [1, 1, 128], strides = [1, 1, 1]} : vector<3x3x128xf32> to vector<1x1x128xf32>
    %14 = vector.shape_cast %13 : vector<1x1x128xf32> to vector<128xf32>
    %15 = vector.shape_cast %14 : vector<128xf32> to vector<1x1x1x128xf32>
    %16 = vector.broadcast %15 : vector<1x1x1x128xf32> to vector<1x8x16x128xf32>
    %17 = arith.mulf %12, %16 : vector<1x8x16x128xf32>
    %18 = arith.addf %11, %17 : vector<1x8x16x128xf32>
    %19 = vector.extract_strided_slice %2 {offsets = [0, 0, 2, 0], sizes = [1, 8, 16, 128], strides = [1, 1, 1, 1]} : vector<1x10x18x128xf32> to vector<1x8x16x128xf32>
    %20 = vector.extract_strided_slice %3 {offsets = [0, 2, 0], sizes = [1, 1, 128], strides = [1, 1, 1]} : vector<3x3x128xf32> to vector<1x1x128xf32>
    %21 = vector.shape_cast %20 : vector<1x1x128xf32> to vector<128xf32>
    %22 = vector.shape_cast %21 : vector<128xf32> to vector<1x1x1x128xf32>
    %23 = vector.broadcast %22 : vector<1x1x1x128xf32> to vector<1x8x16x128xf32>
    %24 = arith.mulf %19, %23 : vector<1x8x16x128xf32>
    %25 = arith.addf %18, %24 : vector<1x8x16x128xf32>
    %26 = vector.extract_strided_slice %2 {offsets = [0, 1, 0, 0], sizes = [1, 8, 16, 128], strides = [1, 1, 1, 1]} : vector<1x10x18x128xf32> to vector<1x8x16x128xf32>
    %27 = vector.extract_strided_slice %3 {offsets = [1, 0, 0], sizes = [1, 1, 128], strides = [1, 1, 1]} : vector<3x3x128xf32> to vector<1x1x128xf32>
    %28 = vector.shape_cast %27 : vector<1x1x128xf32> to vector<128xf32>
    %29 = vector.shape_cast %28 : vector<128xf32> to vector<1x1x1x128xf32>
    %30 = vector.broadcast %29 : vector<1x1x1x128xf32> to vector<1x8x16x128xf32>
    %31 = arith.mulf %26, %30 : vector<1x8x16x128xf32>
    %32 = arith.addf %25, %31 : vector<1x8x16x128xf32>
    %33 = vector.extract_strided_slice %2 {offsets = [0, 1, 1, 0], sizes = [1, 8, 16, 128], strides = [1, 1, 1, 1]} : vector<1x10x18x128xf32> to vector<1x8x16x128xf32>
    %34 = vector.extract_strided_slice %3 {offsets = [1, 1, 0], sizes = [1, 1, 128], strides = [1, 1, 1]} : vector<3x3x128xf32> to vector<1x1x128xf32>
    %35 = vector.shape_cast %34 : vector<1x1x128xf32> to vector<128xf32>
    %36 = vector.shape_cast %35 : vector<128xf32> to vector<1x1x1x128xf32>
    %37 = vector.broadcast %36 : vector<1x1x1x128xf32> to vector<1x8x16x128xf32>
    %38 = arith.mulf %33, %37 : vector<1x8x16x128xf32>
    %39 = arith.addf %32, %38 : vector<1x8x16x128xf32>
    %40 = vector.extract_strided_slice %2 {offsets = [0, 1, 2, 0], sizes = [1, 8, 16, 128], strides = [1, 1, 1, 1]} : vector<1x10x18x128xf32> to vector<1x8x16x128xf32>
    %41 = vector.extract_strided_slice %3 {offsets = [1, 2, 0], sizes = [1, 1, 128], strides = [1, 1, 1]} : vector<3x3x128xf32> to vector<1x1x128xf32>
    %42 = vector.shape_cast %41 : vector<1x1x128xf32> to vector<128xf32>
    %43 = vector.shape_cast %42 : vector<128xf32> to vector<1x1x1x128xf32>
    %44 = vector.broadcast %43 : vector<1x1x1x128xf32> to vector<1x8x16x128xf32>
    %45 = arith.mulf %40, %44 : vector<1x8x16x128xf32>
    %46 = arith.addf %39, %45 : vector<1x8x16x128xf32>
    %47 = vector.extract_strided_slice %2 {offsets = [0, 2, 0, 0], sizes = [1, 8, 16, 128], strides = [1, 1, 1, 1]} : vector<1x10x18x128xf32> to vector<1x8x16x128xf32>
    %48 = vector.extract_strided_slice %3 {offsets = [2, 0, 0], sizes = [1, 1, 128], strides = [1, 1, 1]} : vector<3x3x128xf32> to vector<1x1x128xf32>
    %49 = vector.shape_cast %48 : vector<1x1x128xf32> to vector<128xf32>
    %50 = vector.shape_cast %49 : vector<128xf32> to vector<1x1x1x128xf32>
    %51 = vector.broadcast %50 : vector<1x1x1x128xf32> to vector<1x8x16x128xf32>
    %52 = arith.mulf %47, %51 : vector<1x8x16x128xf32>
    %53 = arith.addf %46, %52 : vector<1x8x16x128xf32>
    %54 = vector.extract_strided_slice %2 {offsets = [0, 2, 1, 0], sizes = [1, 8, 16, 128], strides = [1, 1, 1, 1]} : vector<1x10x18x128xf32> to vector<1x8x16x128xf32>
    %55 = vector.extract_strided_slice %3 {offsets = [2, 1, 0], sizes = [1, 1, 128], strides = [1, 1, 1]} : vector<3x3x128xf32> to vector<1x1x128xf32>
    %56 = vector.shape_cast %55 : vector<1x1x128xf32> to vector<128xf32>
    %57 = vector.shape_cast %56 : vector<128xf32> to vector<1x1x1x128xf32>
    %58 = vector.broadcast %57 : vector<1x1x1x128xf32> to vector<1x8x16x128xf32>
    %59 = arith.mulf %54, %58 : vector<1x8x16x128xf32>
    %60 = arith.addf %53, %59 : vector<1x8x16x128xf32>
    %61 = vector.extract_strided_slice %2 {offsets = [0, 2, 2, 0], sizes = [1, 8, 16, 128], strides = [1, 1, 1, 1]} : vector<1x10x18x128xf32> to vector<1x8x16x128xf32>
    %62 = vector.extract_strided_slice %3 {offsets = [2, 2, 0], sizes = [1, 1, 128], strides = [1, 1, 1]} : vector<3x3x128xf32> to vector<1x1x128xf32>
    %63 = vector.shape_cast %62 : vector<1x1x128xf32> to vector<128xf32>
    %64 = vector.shape_cast %63 : vector<128xf32> to vector<1x1x1x128xf32>
    %65 = vector.broadcast %64 : vector<1x1x1x128xf32> to vector<1x8x16x128xf32>
    %66 = arith.mulf %61, %65 : vector<1x8x16x128xf32>
    %67 = arith.addf %60, %66 : vector<1x8x16x128xf32>
    %c0_10 = arith.constant 0 : index
    %c0_11 = arith.constant 0 : index
    %68 = vector.load %arg5[%c0_10, %c0_11] : memref<1x128xf32, #tpu.memory_space<vmem>>, vector<1x128xf32>
    %69 = vector.shape_cast %68 : vector<1x128xf32> to vector<1x1x1x128xf32>
    %70 = vector.broadcast %69 : vector<1x1x1x128xf32> to vector<1x8x16x128xf32>
    %71 = arith.addf %67, %70 : vector<1x8x16x128xf32>
    %72 = vector.shape_cast %71 : vector<1x8x16x128xf32> to vector<128x128xf32>
    %73 = arith.truncf %72 : vector<128x128xf32> to vector<128x128xbf16>
    %c0_12 = arith.constant 0 : index
    %c0_13 = arith.constant 0 : index
    %74 = vector.load %arg6[%c0_12, %c0_13] : memref<128x128xbf16, #tpu.memory_space<vmem>>, vector<128x128xbf16>
    %cst_14 = arith.constant dense<0.000000e+00> : vector<128x128xf32>
    %75 = tpu.matmul %73, %74, %cst_14 {dimension_numbers = #tpu.dot_dimension_numbers<[1], [0], [0], [1], [0, 0, 1, 1], [], []>} : vector<128x128xbf16>, vector<128x128xbf16>, vector<128x128xf32> -> vector<128x128xf32>
    %c0_15 = arith.constant 0 : index
    %c0_16 = arith.constant 0 : index
    %76 = vector.load %arg7[%c0_15, %c0_16] : memref<1x128xf32, #tpu.memory_space<vmem>>, vector<1x128xf32>
    %77 = vector.broadcast %76 : vector<1x128xf32> to vector<128x128xf32>
    %78 = arith.addf %75, %77 : vector<128x128xf32>
    %79 = vector.shape_cast %78 : vector<128x128xf32> to vector<1x8x16x128xf32>
    %c0_17 = arith.constant 0 : index
    %c0_18 = arith.constant 0 : index
    %c0_19 = arith.constant 0 : index
    %c0_20 = arith.constant 0 : index
    %80 = vector.load %arg8[%c0_17, %c0_18, %c0_19, %c0_20] : memref<1x8x16x128xf32, #tpu.memory_space<vmem>>, vector<1x8x16x128xf32>
    tpu.vector_store %arg8[%c0_17, %c0_18, %c0_19, %c0_20], %79 {strides = array<i32>} : memref<1x8x16x128xf32, #tpu.memory_space<vmem>>, vector<1x8x16x128xf32>,
    %cst_21 = arith.constant dense<0.000000e+00> : vector<128xf32>
    %81 = vector.multi_reduction <add>, %78, %cst_21 [0] : vector<128x128xf32> to vector<128xf32>
    %82 = vector.shape_cast %81 : vector<128xf32> to vector<1x128xf32>
    %83 = arith.mulf %78, %78 : vector<128x128xf32>
    %cst_22 = arith.constant dense<0.000000e+00> : vector<128xf32>
    %84 = vector.multi_reduction <add>, %83, %cst_22 [0] : vector<128x128xf32> to vector<128xf32>
    %85 = vector.shape_cast %84 : vector<128xf32> to vector<1x128xf32>
    %86 = tpu.concatenate %82, %85 in 0 : vector<1x128xf32>, vector<1x128xf32> -> vector<2x128xf32>
    %87 = vector.shape_cast %86 : vector<2x128xf32> to vector<1x1x2x128xf32>
    %c0_23 = arith.constant 0 : index
    %c0_24 = arith.constant 0 : index
    %c0_25 = arith.constant 0 : index
    %c0_26 = arith.constant 0 : index
    %88 = vector.load %arg9[%c0_23, %c0_24, %c0_25, %c0_26] : memref<1x1x2x128xf32, #tpu.memory_space<vmem>>, vector<1x1x2x128xf32>
    tpu.vector_store %arg9[%c0_23, %c0_24, %c0_25, %c0_26], %87 {strides = array<i32>} : memref<1x1x2x128xf32, #tpu.memory_space<vmem>>, vector<1x1x2x128xf32>,
    return
  }
  func.func @transform_0(%arg0: i32, %arg1: i32) -> (i32, i32, i32, i32) {
    %c0_i32 = arith.constant 0 : i32
    %c0_i32_0 = arith.constant 0 : i32
    %c0_i32_1 = arith.constant 0 : i32
    return %arg0, %arg1, %c0_i32, %c0_i32_0 : i32, i32, i32, i32
  }
  func.func @transform_1(%arg0: i32, %arg1: i32) -> (i32, i32, i32, i32) {
    %c1_i32 = arith.constant 1 : i32
    %0 = arith.addi %arg1, %c1_i32 : i32
    %c0_i32 = arith.constant 0 : i32
    %c0_i32_0 = arith.constant 0 : i32
    %c0_i32_1 = arith.constant 0 : i32
    return %arg0, %0, %c0_i32, %c0_i32_0 : i32, i32, i32, i32
  }
  func.func @transform_2(%arg0: i32, %arg1: i32) -> (i32, i32, i32) {
    %c0_i32 = arith.constant 0 : i32
    %c0_i32_0 = arith.constant 0 : i32
    %c0_i32_1 = arith.constant 0 : i32
    %c0_i32_2 = arith.constant 0 : i32
    return %c0_i32, %c0_i32_0, %c0_i32_1 : i32, i32, i32
  }
  func.func @transform_3(%arg0: i32, %arg1: i32) -> (i32, i32) {
    %c0_i32 = arith.constant 0 : i32
    %c0_i32_0 = arith.constant 0 : i32
    %c0_i32_1 = arith.constant 0 : i32
    return %c0_i32, %c0_i32_0 : i32, i32
  }
  func.func @transform_4(%arg0: i32, %arg1: i32) -> (i32, i32) {
    %c0_i32 = arith.constant 0 : i32
    %c0_i32_0 = arith.constant 0 : i32
    %c0_i32_1 = arith.constant 0 : i32
    return %c0_i32, %c0_i32_0 : i32, i32
  }
  func.func @transform_5(%arg0: i32, %arg1: i32) -> (i32, i32) {
    %c0_i32 = arith.constant 0 : i32
    %c0_i32_0 = arith.constant 0 : i32
    %c0_i32_1 = arith.constant 0 : i32
    return %c0_i32, %c0_i32_0 : i32, i32
  }
  func.func @transform_6(%arg0: i32, %arg1: i32) -> (i32, i32, i32, i32) {
    %c0_i32 = arith.constant 0 : i32
    %c0_i32_0 = arith.constant 0 : i32
    %c0_i32_1 = arith.constant 0 : i32
    return %arg0, %arg1, %c0_i32, %c0_i32_0 : i32, i32, i32, i32
  }
  func.func @transform_7(%arg0: i32, %arg1: i32) -> (i32, i32, i32, i32) {
    %c0_i32 = arith.constant 0 : i32
    %c0_i32_0 = arith.constant 0 : i32
    %c0_i32_1 = arith.constant 0 : i32
    return %arg0, %arg1, %c0_i32, %c0_i32_0 : i32, i32, i32, i32
  }
}

module attributes {stable_mosaic.version = 11 : i64} {
  func.func @_dsconv_bn_relu_kernel(%arg0: i32, %arg1: i32, %arg2: memref<1x8x16x128xf32, #tpu.memory_space<vmem>>, %arg3: memref<1x128xf32, #tpu.memory_space<vmem>>, %arg4: memref<1x128xf32, #tpu.memory_space<vmem>>, %arg5: memref<1x8x16x128xf32, #tpu.memory_space<vmem>>) attributes {dimension_semantics = [#tpu.dimension_semantics<parallel>, #tpu.dimension_semantics<parallel>], iteration_bounds = array<i64: 2, 2>, scalar_prefetch = 0 : i64, scratch_operands = 0 : i64, tpu.core_type = #tpu.core_type<tc>, window_params = [{transform_indices = @transform_0, window_bounds = array<i64: 1, 8, 16, 128>}, {pipeline_mode = #tpu.pipeline_mode<synchronous>, transform_indices = @transform_1, window_bounds = array<i64: 1, 128>}, {pipeline_mode = #tpu.pipeline_mode<synchronous>, transform_indices = @transform_2, window_bounds = array<i64: 1, 128>}, {transform_indices = @transform_3, window_bounds = array<i64: 1, 8, 16, 128>}]} {
    %c0 = arith.constant 0 : index
    %c0_0 = arith.constant 0 : index
    %c0_1 = arith.constant 0 : index
    %c0_2 = arith.constant 0 : index
    %0 = vector.load %arg2[%c0, %c0_0, %c0_1, %c0_2] : memref<1x8x16x128xf32, #tpu.memory_space<vmem>>, vector<1x8x16x128xf32>
    %c0_3 = arith.constant 0 : index
    %c0_4 = arith.constant 0 : index
    %1 = vector.load %arg3[%c0_3, %c0_4] : memref<1x128xf32, #tpu.memory_space<vmem>>, vector<1x128xf32>
    %2 = vector.shape_cast %1 : vector<1x128xf32> to vector<1x1x1x128xf32>
    %3 = vector.broadcast %2 : vector<1x1x1x128xf32> to vector<1x8x16x128xf32>
    %4 = arith.mulf %0, %3 : vector<1x8x16x128xf32>
    %c0_5 = arith.constant 0 : index
    %c0_6 = arith.constant 0 : index
    %5 = vector.load %arg4[%c0_5, %c0_6] : memref<1x128xf32, #tpu.memory_space<vmem>>, vector<1x128xf32>
    %6 = vector.shape_cast %5 : vector<1x128xf32> to vector<1x1x1x128xf32>
    %7 = vector.broadcast %6 : vector<1x1x1x128xf32> to vector<1x8x16x128xf32>
    %8 = arith.addf %4, %7 : vector<1x8x16x128xf32>
    %cst = arith.constant 0.000000e+00 : f32
    %9 = vector.broadcast %cst : f32 to vector<1x8x16x128xf32>
    %10 = arith.maximumf %8, %9 : vector<1x8x16x128xf32>
    %c0_7 = arith.constant 0 : index
    %c0_8 = arith.constant 0 : index
    %c0_9 = arith.constant 0 : index
    %c0_10 = arith.constant 0 : index
    %11 = vector.load %arg5[%c0_7, %c0_8, %c0_9, %c0_10] : memref<1x8x16x128xf32, #tpu.memory_space<vmem>>, vector<1x8x16x128xf32>
    tpu.vector_store %arg5[%c0_7, %c0_8, %c0_9, %c0_10], %10 {strides = array<i32>} : memref<1x8x16x128xf32, #tpu.memory_space<vmem>>, vector<1x8x16x128xf32>,
    return
  }
  func.func @transform_0(%arg0: i32, %arg1: i32) -> (i32, i32, i32, i32) {
    %c0_i32 = arith.constant 0 : i32
    %c0_i32_0 = arith.constant 0 : i32
    %c0_i32_1 = arith.constant 0 : i32
    return %arg0, %arg1, %c0_i32, %c0_i32_0 : i32, i32, i32, i32
  }
  func.func @transform_1(%arg0: i32, %arg1: i32) -> (i32, i32) {
    %c0_i32 = arith.constant 0 : i32
    %c0_i32_0 = arith.constant 0 : i32
    %c0_i32_1 = arith.constant 0 : i32
    return %c0_i32, %c0_i32_0 : i32, i32
  }
  func.func @transform_2(%arg0: i32, %arg1: i32) -> (i32, i32) {
    %c0_i32 = arith.constant 0 : i32
    %c0_i32_0 = arith.constant 0 : i32
    %c0_i32_1 = arith.constant 0 : i32
    return %c0_i32, %c0_i32_0 : i32, i32
  }
  func.func @transform_3(%arg0: i32, %arg1: i32) -> (i32, i32, i32, i32) {
    %c0_i32 = arith.constant 0 : i32
    %c0_i32_0 = arith.constant 0 : i32
    %c0_i32_1 = arith.constant 0 : i32
    return %arg0, %arg1, %c0_i32, %c0_i32_0 : i32, i32, i32, i32
  }
}

</mosaic_0001>

<llo_original>
// kernel: dsconv_forward.3
$region0: #{dsconv_forward.3}
  #allocation0 [shape = 'u32[]', space=smem, size = 0x4, offset = 0x4, fixed_abs, tag = 'smem constant byte address 0x4 - core index']
  #allocation1 [shape = 'u32[144,128]{1,0:T(1,128)}', space=vmem, size = 0x12000, scoped, tag = 'internal scratch']
  %s0 = inlined_call_operand.vmem [shape: f32[2,16,16,128], index: 0, kind: input, shape index: {}]
  %s1 = inlined_call_operand.vmem [shape: f32[1,128], index: 1, kind: input, shape index: {}]
  %s2 = inlined_call_operand.vmem [shape: f32[1,128], index: 2, kind: input, shape index: {}]
  %s3 = inlined_call_operand.vmem [shape: f32[2,16,16,128], index: 3, kind: output, shape index: {}]
  %s4 = sld [smem:[#allocation0]]
  $region45: #{dsconv_forward.3} parent=0
    _
  %s6 = ssub.s32 1, %s4
  %s7 = scalar_select 0, %s6, %s4
  loop: start=0, step=1, limit=6
  $region2: #{dsconv_forward.3} parent=0 // loop_pre_header
    _
  $region3: #{dsconv_forward.3} parent=0 // loop_header
    %s9 = sphi 0, %s13
    %p10 = scmp.ge.s32.totalorder %s9, 6
    %s16 = sphi 0, %s28
    %s17 = sphi 0, %s24
    %s18 = sphi 0, %s16
    %s19 = sphi 0, %s17
    %s20 = sphi 0, %s18
    %s21 = sphi 0, %s19
    %s33 = sphi 0, %s35
    %s36 = sphi 0, %s33
    %s37 = sphi 0, %s36
    %s53 = sphi 0, %s37
    %s57 = sphi 0, %s57
    %s59 = sphi 0, %s57
    %s60 = sphi 0, %s59
    %s74 = sphi 0, %s60
    %s78 = sphi 0, %s78
    %s80 = sphi 0, %s78
    %s81 = sphi 0, %s80
    %s95 = sphi 0, %s81
    %s103 = sphi 0, %s105
    %s106 = sphi 0, %s103
    %s107 = sphi 0, %s106
    %s123 = sphi 0, %s107
  $region4: #{dsconv_forward.3} parent=0 // loop_header_branch
    %12 = sbr.rel (%p10) target = $region8
  $region5: #{dsconv_forward.3} parent=0 // loop_body
    %s14 = ssub.s32 %s9, 1
    %s15 = ssub.s32 %s9, 2
    %s22 = sadd.s32 1, %s17
    %p23 = scmp.ge.s32.totalorder %s22, 2
    %s24 = scalar_select %p23, 0, %s22
    %s25 = sadd.s32 1, %s16
    %s26 = scalar_select %p23, %s25, %s16
    %p27 = scmp.ge.s32.totalorder %s26, 2
    %s28 = scalar_select %p27, 0, %s26
    %s29 = ssub.s32 %s16, %s28
    %s30 = ssub.s32 %s17, %s24
    %s31 = sor.u32 %s29, %s30
    %p32 = scmp.eq.s32.totalorder %s31, 0
    %s34 = sadd.s32 %s33, 1
    %s35 = scalar_select %p32, %s33, %s34
    %p38 = pneg %p32
    %p39 = scmp.eq.s32.totalorder %s9, 3
    %p40 = por %p38, %p39
    %p41 = scmp.ne.s32.totalorder %s33, %s36
    %p42 = scmp.eq.s32.totalorder %s9, 0
    %p43 = por %p41, %p42
    %p44 = scmp.ne.s32.totalorder %s33, %s36
    %p45 = scmp.eq.s32.totalorder %s14, 3
    %p46 = por %p44, %p45
    %p47 = scmp.ne.s32.totalorder %s36, %s37
    %p48 = scmp.eq.s32.totalorder %s14, 0
    %p49 = por %p47, %p48
    %p50 = scmp.ne.s32.totalorder %s36, %s37
    %p51 = scmp.eq.s32.totalorder %s15, 3
    %p52 = por %p50, %p51
    %p54 = scmp.ne.s32.totalorder %s37, %s53
    %p55 = scmp.eq.s32.totalorder %s15, 0
    %p56 = por %p54, %p55
    %s58 = sadd.s32 %s57, 1
    %p61 = scmp.eq.s32.totalorder %s9, 3
    %p62 = scmp.ne.s32.totalorder %s57, %s59
    %p63 = scmp.eq.s32.totalorder %s9, 0
    %p64 = por %p62, %p63
    %p65 = scmp.ne.s32.totalorder %s57, %s59
    %p66 = scmp.eq.s32.totalorder %s14, 3
    %p67 = por %p65, %p66
    %p68 = scmp.ne.s32.totalorder %s59, %s60
    %p69 = scmp.eq.s32.totalorder %s14, 0
    %p70 = por %p68, %p69
    %p71 = scmp.ne.s32.totalorder %s59, %s60
    %p72 = scmp.eq.s32.totalorder %s15, 3
    %p73 = por %p71, %p72
    %p75 = scmp.ne.s32.totalorder %s60, %s74
    %p76 = scmp.eq.s32.totalorder %s15, 0
    %p77 = por %p75, %p76
    %s79 = sadd.s32 %s78, 1
    %p82 = scmp.eq.s32.totalorder %s9, 3
    %p83 = scmp.ne.s32.totalorder %s78, %s80
    %p84 = scmp.eq.s32.totalorder %s9, 0
    %p85 = por %p83, %p84
    %p86 = scmp.ne.s32.totalorder %s78, %s80
    %p87 = scmp.eq.s32.totalorder %s14, 3
    %p88 = por %p86, %p87
    %p89 = scmp.ne.s32.totalorder %s80, %s81
    %p90 = scmp.eq.s32.totalorder %s14, 0
    %p91 = por %p89, %p90
    %p92 = scmp.ne.s32.totalorder %s80, %s81
    %p93 = scmp.eq.s32.totalorder %s15, 3
    %p94 = por %p92, %p93
    %p96 = scmp.ne.s32.totalorder %s81, %s95
    %p97 = scmp.eq.s32.totalorder %s15, 0
    %p98 = por %p96, %p97
    %s99 = ssub.s32 %s16, %s28
    %s100 = ssub.s32 %s17, %s24
    %s101 = sor.u32 %s99, %s100
    %p102 = scmp.eq.s32.totalorder %s101, 0
    %s104 = sadd.s32 %s103, 1
    %s105 = scalar_select %p102, %s103, %s104
    %p108 = pneg %p102
    %p109 = scmp.eq.s32.totalorder %s9, 3
    %p110 = por %p108, %p109
    %p111 = scmp.ne.s32.totalorder %s103, %s106
    %p112 = scmp.eq.s32.totalorder %s9, 0
    %p113 = por %p111, %p112
    %p114 = scmp.ne.s32.totalorder %s103, %s106
    %p115 = scmp.eq.s32.totalorder %s14, 3
    %p116 = por %p114, %p115
    %p117 = scmp.ne.s32.totalorder %s106, %s107
    %p118 = scmp.eq.s32.totalorder %s14, 0
    %p119 = por %p117, %p118
    %p120 = scmp.ne.s32.totalorder %s106, %s107
    %p121 = scmp.eq.s32.totalorder %s15, 3
    %p122 = por %p120, %p121
    %p124 = scmp.ne.s32.totalorder %s107, %s123
    %p125 = scmp.eq.s32.totalorder %s15, 0
    %p126 = por %p124, %p125
    %p127 = scmp.le.s32.totalorder 1, %s9
    %p128 = scmp.lt.s32.totalorder %s9, 5
    %p129 = pnand %p127, %p128
    %p130 = pneg %p129
    // Predicated region
    $region9: #{dsconv_forward.3} parent=5 // pred_check
      _
    $region10: #{dsconv_forward.3} parent=5 // pred_check_branch
      %132 = sbr.rel (%p129) target = $region12
    $region11: #{dsconv_forward.3} parent=5 // pred_region
      %s133 = ssub.s32 %s9, 1
      // Predicated region
      $region13: #{dsconv_forward.3} parent=11 // pred_check
        %p134 = pneg %p70
      $region14: #{dsconv_forward.3} parent=11 // pred_check_branch
        %136 = sbr.rel (%p134) target = $region16
      $region15: #{dsconv_forward.3} parent=11 // pred_region
        _
      $region16: #{dsconv_forward.3} parent=11 // pred_fallthru
        _
      // Predicated region
      $region17: #{dsconv_forward.3} parent=11 // pred_check
        %p137 = pneg %p91
      $region18: #{dsconv_forward.3} parent=11 // pred_check_branch
        %139 = sbr.rel (%p137) target = $region20
      $region19: #{dsconv_forward.3} parent=11 // pred_region
        _
      $region20: #{dsconv_forward.3} parent=11 // pred_fallthru
        _
    $region12: #{dsconv_forward.3} parent=5 // pred_fallthru
      _
    %p140 = scmp.lt.s32.totalorder %s9, 4
    // Predicated region
    $region21: #{dsconv_forward.3} parent=5 // pred_check
      %p141 = pneg %p140
    $region22: #{dsconv_forward.3} parent=5 // pred_check_branch
      %143 = sbr.rel (%p141) target = $region24
    $region23: #{dsconv_forward.3} parent=5 // pred_region
      // Predicated region
      $region25: #{dsconv_forward.3} parent=23 // pred_check
        %p144 = pneg %p43
      $region26: #{dsconv_forward.3} parent=23 // pred_check_branch
        %146 = sbr.rel (%p144) target = $region28
      $region27: #{dsconv_forward.3} parent=23 // pred_region
        %s147 = smul.u32 8, %s17
        %p148 = scmp.lt.s32.totalorder %s16, 1
        %s149 = scalar_select %p148, %s16, 1
        %p150 = scmp.lt.s32.totalorder %s147, 15
        %s151 = scalar_select %p150, %s147, 15
        %s152 = smul.addr %s151, 2
        %s153 = smul.addr %s149, 32
        %s154 = sadd.s32 %s152, %s153
        %s155 = smul.addr %s154, 8
        %s156 = scalar_lea.vmem %s0, %s155
        %s157 = smul.u32 8, %s17
      $region28: #{dsconv_forward.3} parent=23 // pred_fallthru
        _
    $region24: #{dsconv_forward.3} parent=5 // pred_fallthru
      _
    %p158 = scmp.le.s32.totalorder 1, %s9
    %p159 = scmp.lt.s32.totalorder %s9, 5
    %p160 = pnand %p158, %p159
    %p161 = pneg %p160
    // Predicated region
    $region29: #{dsconv_forward.3} parent=5 // pred_check
      _
    $region30: #{dsconv_forward.3} parent=5 // pred_check_branch
      %163 = sbr.rel (%p160) target = $region32
    $region31: #{dsconv_forward.3} parent=5 // pred_region
      %s164 = ssub.s32 %s9, 1
      %s165 = smul.u32 8, %s19
      %p166 = scmp.lt.s32.totalorder %s18, 1
      %s167 = scalar_select %p166, %s18, 1
      %p168 = scmp.lt.s32.totalorder %s165, 15
      %s169 = scalar_select %p168, %s165, 15
      %s170 = smul.addr %s169, 2
      %s171 = smul.addr %s167, 32
      %s172 = sadd.s32 %s170, %s171
      %s173 = smul.addr %s172, 8
      %s174 = scalar_lea.vmem %s0, %s173
      %p175 = pneg %p49
      %p176 = pneg %p46
      %p177 = pneg %p70
      %p178 = pneg %p67
      %p179 = pneg %p91
      %p180 = pneg %p88
      %p181 = pneg %p119
      %p182 = pneg %p116
      %s183 = smul.u32 8, %s19
      %p184 = scmp.lt.s32.totalorder %s18, 1
      %s185 = scalar_select %p184, %s18, 1
      %p186 = scmp.lt.s32.totalorder %s183, 15
      %s187 = scalar_select %p186, %s183, 15
      %s188 = smul.addr %s187, 2
      %s189 = smul.addr %s185, 32
      %s190 = sadd.s32 %s188, %s189
      %s191 = smul.addr %s190, 8
      %s192 = scalar_lea.vmem %s3, %s191
      %s193 = smul.u32 8, %s19
      %p194 = scmp.lt.s32.totalorder %s18, 1
      %s195 = scalar_select %p194, %s18, 1
      %p196 = scmp.lt.s32.totalorder %s193, 15
      %s197 = scalar_select %p196, %s193, 15
      %s198 = smul.addr %s197, 2
      %s199 = smul.addr %s195, 32
      %s200 = sadd.s32 %s198, %s199
      %s201 = smul.addr %s200, 8
      %s202 = scalar_lea.vmem %s0, %s201
      %s203 = smul.u32 8, %s19
      %s204 = smul.u32 8, %s19
      %p205 = scmp.lt.s32.totalorder %s18, 1
      %s206 = scalar_select %p205, %s18, 1
      %p207 = scmp.lt.s32.totalorder %s204, 15
      %s208 = scalar_select %p207, %s204, 15
      %s209 = smul.addr %s208, 2
      %s210 = smul.addr %s206, 32
      %s211 = sadd.s32 %s209, %s210
      %s212 = smul.addr %s211, 8
      %s213 = scalar_lea.vmem %s3, %s212
      %s214 = smul.u32 8, %s19
      %v215 = vld [vmem:[%s202] sm:$0xff]
      %v216 = vld [vmem:[%s202 + $0x8] sm:$0xff]
      %v217 = vld [vmem:[%s202 + $0x10] sm:$0xff]
      %v218 = vld [vmem:[%s202 + $0x18] sm:$0xff]
      %v219 = vld [vmem:[%s202 + $0x20] sm:$0xff]
      %v220 = vld [vmem:[%s202 + $0x28] sm:$0xff]
      %v221 = vld [vmem:[%s202 + $0x30] sm:$0xff]
      %v222 = vld [vmem:[%s202 + $0x38] sm:$0xff]
      %v223 = vld [vmem:[%s202 + $0x40] sm:$0xff]
      %v224 = vld [vmem:[%s202 + $0x48] sm:$0xff]
      %v225 = vld [vmem:[%s202 + $0x50] sm:$0xff]
      %v226 = vld [vmem:[%s202 + $0x58] sm:$0xff]
      %v227 = vld [vmem:[%s202 + $0x60] sm:$0xff]
      %v228 = vld [vmem:[%s202 + $0x68] sm:$0xff]
      %v229 = vld [vmem:[%s202 + $0x70] sm:$0xff]
      %v230 = vld [vmem:[%s202 + $0x78] sm:$0xff]
      %v231 = vld [vmem:[%s1] sm:$0x1]
      %v233 = vlaneseq
      %v234 = vshrl.u32 %v233, 7
      %v235 = vsub.s32 0, %v234
      %v236 = vrot.slane %v231, %v235
      %v238 = vmul.f32 %v215, %v236
      %v239 = vmul.f32 %v216, %v236
      %v240 = vmul.f32 %v217, %v236
      %v241 = vmul.f32 %v218, %v236
      %v242 = vmul.f32 %v219, %v236
      %v243 = vmul.f32 %v220, %v236
      %v244 = vmul.f32 %v221, %v236
      %v245 = vmul.f32 %v222, %v236
      %v246 = vmul.f32 %v223, %v236
      %v247 = vmul.f32 %v224, %v236
      %v248 = vmul.f32 %v225, %v236
      %v249 = vmul.f32 %v226, %v236
      %v250 = vmul.f32 %v227, %v236
      %v251 = vmul.f32 %v228, %v236
      %v252 = vmul.f32 %v229, %v236
      %v253 = vmul.f32 %v230, %v236
      %v254 = vld [vmem:[%s2] sm:$0x1]
      %v256 = vlaneseq
      %v257 = vshrl.u32 %v256, 7
      %v258 = vsub.s32 0, %v257
      %v259 = vrot.slane %v254, %v258
      %v261 = vadd.f32 %v238, %v259
      %v262 = vadd.f32 %v239, %v259
      %v263 = vadd.f32 %v240, %v259
      %v264 = vadd.f32 %v241, %v259
      %v265 = vadd.f32 %v242, %v259
      %v266 = vadd.f32 %v243, %v259
      %v267 = vadd.f32 %v244, %v259
      %v268 = vadd.f32 %v245, %v259
      %v269 = vadd.f32 %v246, %v259
      %v270 = vadd.f32 %v247, %v259
      %v271 = vadd.f32 %v248, %v259
      %v272 = vadd.f32 %v249, %v259
      %v273 = vadd.f32 %v250, %v259
      %v274 = vadd.f32 %v251, %v259
      %v275 = vadd.f32 %v252, %v259
      %v276 = vadd.f32 %v253, %v259
      %v277 = vmax.f32 %v261, 0.0
      %v278 = vmax.f32 %v262, 0.0
      %v279 = vmax.f32 %v263, 0.0
      %v280 = vmax.f32 %v264, 0.0
      %v281 = vmax.f32 %v265, 0.0
      %v282 = vmax.f32 %v266, 0.0
      %v283 = vmax.f32 %v267, 0.0
      %v284 = vmax.f32 %v268, 0.0
      %v285 = vmax.f32 %v269, 0.0
      %v286 = vmax.f32 %v270, 0.0
      %v287 = vmax.f32 %v271, 0.0
      %v288 = vmax.f32 %v272, 0.0
      %v289 = vmax.f32 %v273, 0.0
      %v290 = vmax.f32 %v274, 0.0
      %v291 = vmax.f32 %v275, 0.0
      %v292 = vmax.f32 %v276, 0.0
      %293 = vst [vmem:[%s213] sm:$0xff] %v277
      %294 = vst [vmem:[%s213 + $0x8] sm:$0xff] %v278
      %295 = vst [vmem:[%s213 + $0x10] sm:$0xff] %v279
      %296 = vst [vmem:[%s213 + $0x18] sm:$0xff] %v280
      %297 = vst [vmem:[%s213 + $0x20] sm:$0xff] %v281
      %298 = vst [vmem:[%s213 + $0x28] sm:$0xff] %v282
      %299 = vst [vmem:[%s213 + $0x30] sm:$0xff] %v283
      %300 = vst [vmem:[%s213 + $0x38] sm:$0xff] %v284
      %301 = vst [vmem:[%s213 + $0x40] sm:$0xff] %v285
      %302 = vst [vmem:[%s213 + $0x48] sm:$0xff] %v286
      %303 = vst [vmem:[%s213 + $0x50] sm:$0xff] %v287
      %304 = vst [vmem:[%s213 + $0x58] sm:$0xff] %v288
      %305 = vst [vmem:[%s213 + $0x60] sm:$0xff] %v289
      %306 = vst [vmem:[%s213 + $0x68] sm:$0xff] %v290
      %307 = vst [vmem:[%s213 + $0x70] sm:$0xff] %v291
      %308 = vst [vmem:[%s213 + $0x78] sm:$0xff] %v292
      %s309 = smul.u32 8, %s19
      %p310 = scmp.lt.s32.totalorder %s18, 1
      %s311 = scalar_select %p310, %s18, 1
      %p312 = scmp.lt.s32.totalorder %s309, 15
      %s313 = scalar_select %p312, %s309, 15
      %s314 = smul.addr %s313, 2
      %s315 = smul.addr %s311, 32
      %s316 = sadd.s32 %s314, %s315
      %s317 = smul.addr %s316, 8
      %s318 = scalar_lea.vmem %s3, %s317
      // Predicated region
      $region33: #{dsconv_forward.3} parent=31 // pred_check
        %p319 = pneg %p116
      $region34: #{dsconv_forward.3} parent=31 // pred_check_branch
        %321 = sbr.rel (%p319) target = $region36
      $region35: #{dsconv_forward.3} parent=31 // pred_region
        %s322 = smul.u32 8, %s19
      $region36: #{dsconv_forward.3} parent=31 // pred_fallthru
        _
    $region32: #{dsconv_forward.3} parent=5 // pred_fallthru
      _
    %p323 = scmp.le.s32.totalorder 2, %s9
    // Predicated region
    $region37: #{dsconv_forward.3} parent=5 // pred_check
      %p324 = pneg %p323
    $region38: #{dsconv_forward.3} parent=5 // pred_check_branch
      %326 = sbr.rel (%p324) target = $region40
    $region39: #{dsconv_forward.3} parent=5 // pred_region
      %s327 = ssub.s32 %s9, 2
      // Predicated region
      $region41: #{dsconv_forward.3} parent=39 // pred_check
        %p328 = pneg %p122
      $region42: #{dsconv_forward.3} parent=39 // pred_check_branch
        %330 = sbr.rel (%p328) target = $region44
      $region43: #{dsconv_forward.3} parent=39 // pred_region
        %s331 = smul.u32 8, %s21
        %p332 = scmp.lt.s32.totalorder %s20, 1
        %s333 = scalar_select %p332, %s20, 1
        %p334 = scmp.lt.s32.totalorder %s331, 15
        %s335 = scalar_select %p334, %s331, 15
        %s336 = smul.addr %s335, 2
        %s337 = smul.addr %s333, 32
        %s338 = sadd.s32 %s336, %s337
        %s339 = smul.addr %s338, 8
        %s340 = scalar_lea.vmem %s3, %s339
      $region44: #{dsconv_forward.3} parent=39 // pred_fallthru
        _
    $region40: #{dsconv_forward.3} parent=5 // pred_fallthru
      _
  $region6: #{dsconv_forward.3} parent=0 // loop_footer
    %s13 = sadd.s32 1, %s9
  $region7: #{dsconv_forward.3} parent=0 // loop_footer_branch
    %8 = sbr.rel target = $region3
  $region8: #{dsconv_forward.3} parent=0 // loop_exit
    _

// kernel: dsconv_forward.2
$region0: #{dsconv_forward.2}
  #allocation0 [shape = 'u32[]', space=smem, size = 0x4, offset = 0x4, fixed_abs, tag = 'smem constant byte address 0x4 - core index']
  #allocation1 [shape = 'u32[144,128]{1,0:T(1,128)}', space=vmem, size = 0x12000, scoped, tag = 'internal scratch']
  %s0 = inlined_call_operand.vmem [shape: f32[2,24,18,128], index: 0, kind: input, shape index: {}, may-alias: {0,1}]
  %s1 = inlined_call_operand.vmem [shape: f32[2,24,18,128], index: 1, kind: input, shape index: {}, may-alias: {0,1}]
  %s2 = inlined_call_operand.vmem [shape: f32[3,3,128], index: 2, kind: input, shape index: {}]
  %s3 = inlined_call_operand.vmem [shape: f32[1,128], index: 3, kind: input, shape index: {}]
  %s4 = inlined_call_operand.vmem [shape: bf16[128,128], index: 4, kind: input, shape index: {}]
  %s5 = inlined_call_operand.vmem [shape: f32[1,128], index: 5, kind: input, shape index: {}]
  %s6 = inlined_call_operand.vmem [shape: f32[2,16,16,128], index: 6, kind: output, shape index: {0}]
  %s7 = inlined_call_operand.vmem [shape: f32[2,2,2,128], index: 7, kind: output, shape index: {1}]
  %8 = xla_tuple %s6, %s7
  %s9 = sld [smem:[#allocation0]]
  $region65: #{dsconv_forward.2} parent=0
    _
  %s11 = ssub.s32 1, %s9
  %s12 = scalar_select 0, %s11, %s9
  loop: start=0, step=1, limit=6
  $region2: #{dsconv_forward.2} parent=0 // loop_pre_header
    _
  $region3: #{dsconv_forward.2} parent=0 // loop_header
    %s14 = sphi 0, %s18
    %p15 = scmp.ge.s32.totalorder %s14, 6
    %s21 = sphi 0, %s33
    %s22 = sphi 0, %s29
    %s23 = sphi 0, %s21
    %s24 = sphi 0, %s22
    %s25 = sphi 0, %s23
    %s26 = sphi 0, %s24
    %s38 = sphi 0, %s40
    %s41 = sphi 0, %s38
    %s42 = sphi 0, %s41
    %s58 = sphi 0, %s42
    %s68 = sphi 0, %s70
    %s71 = sphi 0, %s68
    %s72 = sphi 0, %s71
    %s88 = sphi 0, %s72
    %s92 = sphi 0, %s92
    %s94 = sphi 0, %s92
    %s95 = sphi 0, %s94
    %s109 = sphi 0, %s95
    %s113 = sphi 0, %s113
    %s115 = sphi 0, %s113
    %s116 = sphi 0, %s115
    %s130 = sphi 0, %s116
    %s134 = sphi 0, %s134
    %s136 = sphi 0, %s134
    %s137 = sphi 0, %s136
    %s151 = sphi 0, %s137
    %s155 = sphi 0, %s155
    %s157 = sphi 0, %s155
    %s158 = sphi 0, %s157
    %s172 = sphi 0, %s158
    %s180 = sphi 0, %s182
    %s183 = sphi 0, %s180
    %s184 = sphi 0, %s183
    %s200 = sphi 0, %s184
    %s208 = sphi 0, %s210
    %s211 = sphi 0, %s208
    %s212 = sphi 0, %s211
    %s228 = sphi 0, %s212
  $region4: #{dsconv_forward.2} parent=0 // loop_header_branch
    %17 = sbr.rel (%p15) target = $region8
  $region5: #{dsconv_forward.2} parent=0 // loop_body
    %s19 = ssub.s32 %s14, 1
    %s20 = ssub.s32 %s14, 2
    %s27 = sadd.s32 1, %s22
    %p28 = scmp.ge.s32.totalorder %s27, 2
    %s29 = scalar_select %p28, 0, %s27
    %s30 = sadd.s32 1, %s21
    %s31 = scalar_select %p28, %s30, %s21
    %p32 = scmp.ge.s32.totalorder %s31, 2
    %s33 = scalar_select %p32, 0, %s31
    %s34 = ssub.s32 %s21, %s33
    %s35 = ssub.s32 %s22, %s29
    %s36 = sor.u32 %s34, %s35
    %p37 = scmp.eq.s32.totalorder %s36, 0
    %s39 = sadd.s32 %s38, 1
    %s40 = scalar_select %p37, %s38, %s39
    %p43 = pneg %p37
    %p44 = scmp.eq.s32.totalorder %s14, 3
    %p45 = por %p43, %p44
    %p46 = scmp.ne.s32.totalorder %s38, %s41
    %p47 = scmp.eq.s32.totalorder %s14, 0
    %p48 = por %p46, %p47
    %p49 = scmp.ne.s32.totalorder %s38, %s41
    %p50 = scmp.eq.s32.totalorder %s19, 3
    %p51 = por %p49, %p50
    %p52 = scmp.ne.s32.totalorder %s41, %s42
    %p53 = scmp.eq.s32.totalorder %s19, 0
    %p54 = por %p52, %p53
    %p55 = scmp.ne.s32.totalorder %s41, %s42
    %p56 = scmp.eq.s32.totalorder %s20, 3
    %p57 = por %p55, %p56
    %p59 = scmp.ne.s32.totalorder %s42, %s58
    %p60 = scmp.eq.s32.totalorder %s20, 0
    %p61 = por %p59, %p60
    %s62 = sadd.s32 %s22, 1
    %s63 = sadd.s32 %s29, 1
    %s64 = ssub.s32 %s21, %s33
    %s65 = ssub.s32 %s62, %s63
    %s66 = sor.u32 %s64, %s65
    %p67 = scmp.eq.s32.totalorder %s66, 0
    %s69 = sadd.s32 %s68, 1
    %s70 = scalar_select %p67, %s68, %s69
    %p73 = pneg %p67
    %p74 = scmp.eq.s32.totalorder %s14, 3
    %p75 = por %p73, %p74
    %p76 = scmp.ne.s32.totalorder %s68, %s71
    %p77 = scmp.eq.s32.totalorder %s14, 0
    %p78 = por %p76, %p77
    %p79 = scmp.ne.s32.totalorder %s68, %s71
    %p80 = scmp.eq.s32.totalorder %s19, 3
    %p81 = por %p79, %p80
    %p82 = scmp.ne.s32.totalorder %s71, %s72
    %p83 = scmp.eq.s32.totalorder %s19, 0
    %p84 = por %p82, %p83
    %p85 = scmp.ne.s32.totalorder %s71, %s72
    %p86 = scmp.eq.s32.totalorder %s20, 3
    %p87 = por %p85, %p86
    %p89 = scmp.ne.s32.totalorder %s72, %s88
    %p90 = scmp.eq.s32.totalorder %s20, 0
    %p91 = por %p89, %p90
    %s93 = sadd.s32 %s92, 1
    %p96 = scmp.eq.s32.totalorder %s14, 3
    %p97 = scmp.ne.s32.totalorder %s92, %s94
    %p98 = scmp.eq.s32.totalorder %s14, 0
    %p99 = por %p97, %p98
    %p100 = scmp.ne.s32.totalorder %s92, %s94
    %p101 = scmp.eq.s32.totalorder %s19, 3
    %p102 = por %p100, %p101
    %p103 = scmp.ne.s32.totalorder %s94, %s95
    %p104 = scmp.eq.s32.totalorder %s19, 0
    %p105 = por %p103, %p104
    %p106 = scmp.ne.s32.totalorder %s94, %s95
    %p107 = scmp.eq.s32.totalorder %s20, 3
    %p108 = por %p106, %p107
    %p110 = scmp.ne.s32.totalorder %s95, %s109
    %p111 = scmp.eq.s32.totalorder %s20, 0
    %p112 = por %p110, %p111
    %s114 = sadd.s32 %s113, 1
    %p117 = scmp.eq.s32.totalorder %s14, 3
    %p118 = scmp.ne.s32.totalorder %s113, %s115
    %p119 = scmp.eq.s32.totalorder %s14, 0
    %p120 = por %p118, %p119
    %p121 = scmp.ne.s32.totalorder %s113, %s115
    %p122 = scmp.eq.s32.totalorder %s19, 3
    %p123 = por %p121, %p122
    %p124 = scmp.ne.s32.totalorder %s115, %s116
    %p125 = scmp.eq.s32.totalorder %s19, 0
    %p126 = por %p124, %p125
    %p127 = scmp.ne.s32.totalorder %s115, %s116
    %p128 = scmp.eq.s32.totalorder %s20, 3
    %p129 = por %p127, %p128
    %p131 = scmp.ne.s32.totalorder %s116, %s130
    %p132 = scmp.eq.s32.totalorder %s20, 0
    %p133 = por %p131, %p132
    %s135 = sadd.s32 %s134, 1
    %p138 = scmp.eq.s32.totalorder %s14, 3
    %p139 = scmp.ne.s32.totalorder %s134, %s136
    %p140 = scmp.eq.s32.totalorder %s14, 0
    %p141 = por %p139, %p140
    %p142 = scmp.ne.s32.totalorder %s134, %s136
    %p143 = scmp.eq.s32.totalorder %s19, 3
    %p144 = por %p142, %p143
    %p145 = scmp.ne.s32.totalorder %s136, %s137
    %p146 = scmp.eq.s32.totalorder %s19, 0
    %p147 = por %p145, %p146
    %p148 = scmp.ne.s32.totalorder %s136, %s137
    %p149 = scmp.eq.s32.totalorder %s20, 3
    %p150 = por %p148, %p149
    %p152 = scmp.ne.s32.totalorder %s137, %s151
    %p153 = scmp.eq.s32.totalorder %s20, 0
    %p154 = por %p152, %p153
    %s156 = sadd.s32 %s155, 1
    %p159 = scmp.eq.s32.totalorder %s14, 3
    %p160 = scmp.ne.s32.totalorder %s155, %s157
    %p161 = scmp.eq.s32.totalorder %s14, 0
    %p162 = por %p160, %p161
    %p163 = scmp.ne.s32.totalorder %s155, %s157
    %p164 = scmp.eq.s32.totalorder %s19, 3
    %p165 = por %p163, %p164
    %p166 = scmp.ne.s32.totalorder %s157, %s158
    %p167 = scmp.eq.s32.totalorder %s19, 0
    %p168 = por %p166, %p167
    %p169 = scmp.ne.s32.totalorder %s157, %s158
    %p170 = scmp.eq.s32.totalorder %s20, 3
    %p171 = por %p169, %p170
    %p173 = scmp.ne.s32.totalorder %s158, %s172
    %p174 = scmp.eq.s32.totalorder %s20, 0
    %p175 = por %p173, %p174
    %s176 = ssub.s32 %s21, %s33
    %s177 = ssub.s32 %s22, %s29
    %s178 = sor.u32 %s176, %s177
    %p179 = scmp.eq.s32.totalorder %s178, 0
    %s181 = sadd.s32 %s180, 1
    %s182 = scalar_select %p179, %s180, %s181
    %p185 = pneg %p179
    %p186 = scmp.eq.s32.totalorder %s14, 3
    %p187 = por %p185, %p186
    %p188 = scmp.ne.s32.totalorder %s180, %s183
    %p189 = scmp.eq.s32.totalorder %s14, 0
    %p190 = por %p188, %p189
    %p191 = scmp.ne.s32.totalorder %s180, %s183
    %p192 = scmp.eq.s32.totalorder %s19, 3
    %p193 = por %p191, %p192
    %p194 = scmp.ne.s32.totalorder %s183, %s184
    %p195 = scmp.eq.s32.totalorder %s19, 0
    %p196 = por %p194, %p195
    %p197 = scmp.ne.s32.totalorder %s183, %s184
    %p198 = scmp.eq.s32.totalorder %s20, 3
    %p199 = por %p197, %p198
    %p201 = scmp.ne.s32.totalorder %s184, %s200
    %p202 = scmp.eq.s32.totalorder %s20, 0
    %p203 = por %p201, %p202
    %s204 = ssub.s32 %s21, %s33
    %s205 = ssub.s32 %s22, %s29
    %s206 = sor.u32 %s204, %s205
    %p207 = scmp.eq.s32.totalorder %s206, 0
    %s209 = sadd.s32 %s208, 1
    %s210 = scalar_select %p207, %s208, %s209
    %p213 = pneg %p207
    %p214 = scmp.eq.s32.totalorder %s14, 3
    %p215 = por %p213, %p214
    %p216 = scmp.ne.s32.totalorder %s208, %s211
    %p217 = scmp.eq.s32.totalorder %s14, 0
    %p218 = por %p216, %p217
    %p219 = scmp.ne.s32.totalorder %s208, %s211
    %p220 = scmp.eq.s32.totalorder %s19, 3
    %p221 = por %p219, %p220
    %p222 = scmp.ne.s32.totalorder %s211, %s212
    %p223 = scmp.eq.s32.totalorder %s19, 0
    %p224 = por %p222, %p223
    %p225 = scmp.ne.s32.totalorder %s211, %s212
    %p226 = scmp.eq.s32.totalorder %s20, 3
    %p227 = por %p225, %p226
    %p229 = scmp.ne.s32.totalorder %s212, %s228
    %p230 = scmp.eq.s32.totalorder %s20, 0
    %p231 = por %p229, %p230
    %p232 = scmp.le.s32.totalorder 1, %s14
    %p233 = scmp.lt.s32.totalorder %s14, 5
    %p234 = pnand %p232, %p233
    %p235 = pneg %p234
    // Predicated region
    $region9: #{dsconv_forward.2} parent=5 // pred_check
      _
    $region10: #{dsconv_forward.2} parent=5 // pred_check_branch
      %237 = sbr.rel (%p234) target = $region12
    $region11: #{dsconv_forward.2} parent=5 // pred_region
      %s238 = ssub.s32 %s14, 1
      // Predicated region
      $region13: #{dsconv_forward.2} parent=11 // pred_check
        %p239 = pneg %p105
      $region14: #{dsconv_forward.2} parent=11 // pred_check_branch
        %241 = sbr.rel (%p239) target = $region16
      $region15: #{dsconv_forward.2} parent=11 // pred_region
        _
      $region16: #{dsconv_forward.2} parent=11 // pred_fallthru
        _
      // Predicated region
      $region17: #{dsconv_forward.2} parent=11 // pred_check
        %p242 = pneg %p126
      $region18: #{dsconv_forward.2} parent=11 // pred_check_branch
        %244 = sbr.rel (%p242) target = $region20
      $region19: #{dsconv_forward.2} parent=11 // pred_region
        _
      $region20: #{dsconv_forward.2} parent=11 // pred_fallthru
        _
      // Predicated region
      $region21: #{dsconv_forward.2} parent=11 // pred_check
        %p245 = pneg %p147
      $region22: #{dsconv_forward.2} parent=11 // pred_check_branch
        %247 = sbr.rel (%p245) target = $region24
      $region23: #{dsconv_forward.2} parent=11 // pred_region
        _
      $region24: #{dsconv_forward.2} parent=11 // pred_fallthru
        _
      // Predicated region
      $region25: #{dsconv_forward.2} parent=11 // pred_check
        %p248 = pneg %p168
      $region26: #{dsconv_forward.2} parent=11 // pred_check_branch
        %250 = sbr.rel (%p248) target = $region28
      $region27: #{dsconv_forward.2} parent=11 // pred_region
        _
      $region28: #{dsconv_forward.2} parent=11 // pred_fallthru
        _
    $region12: #{dsconv_forward.2} parent=5 // pred_fallthru
      _
    %p251 = scmp.lt.s32.totalorder %s14, 4
    // Predicated region
    $region29: #{dsconv_forward.2} parent=5 // pred_check
      %p252 = pneg %p251
    $region30: #{dsconv_forward.2} parent=5 // pred_check_branch
      %254 = sbr.rel (%p252) target = $region32
    $region31: #{dsconv_forward.2} parent=5 // pred_region
      // Predicated region
      $region33: #{dsconv_forward.2} parent=31 // pred_check
        %p255 = pneg %p48
      $region34: #{dsconv_forward.2} parent=31 // pred_check_branch
        %257 = sbr.rel (%p255) target = $region36
      $region35: #{dsconv_forward.2} parent=31 // pred_region
        %s258 = smul.u32 8, %s22
        %p259 = scmp.lt.s32.totalorder %s21, 1
        %s260 = scalar_select %p259, %s21, 1
        %p261 = scmp.lt.s32.totalorder %s258, 23
        %s262 = scalar_select %p261, %s258, 23
        %s263 = smul.addr %s262, 3
        %s264 = smul.addr %s260, 72
        %s265 = sadd.s32 %s263, %s264
        %s266 = smul.addr %s265, 8
        %s267 = scalar_lea.vmem %s0, %s266
        %s268 = smul.u32 8, %s22
      $region36: #{dsconv_forward.2} parent=31 // pred_fallthru
        _
      // Predicated region
      $region37: #{dsconv_forward.2} parent=31 // pred_check
        %p269 = pneg %p78
      $region38: #{dsconv_forward.2} parent=31 // pred_check_branch
        %271 = sbr.rel (%p269) target = $region40
      $region39: #{dsconv_forward.2} parent=31 // pred_region
        %s272 = sadd.s32 %s22, 1
        %s273 = smul.u32 8, %s272
        %p274 = scmp.lt.s32.totalorder %s21, 1
        %s275 = scalar_select %p274, %s21, 1
        %p276 = scmp.lt.s32.totalorder %s273, 23
        %s277 = scalar_select %p276, %s273, 23
        %s278 = smul.addr %s277, 3
        %s279 = smul.addr %s275, 72
        %s280 = sadd.s32 %s278, %s279
        %s281 = smul.addr %s280, 8
        %s282 = scalar_lea.vmem %s1, %s281
        %s283 = sadd.s32 %s22, 1
        %s284 = smul.u32 8, %s283
      $region40: #{dsconv_forward.2} parent=31 // pred_fallthru
        _
    $region32: #{dsconv_forward.2} parent=5 // pred_fallthru
      _
    %p285 = scmp.le.s32.totalorder 1, %s14
    %p286 = scmp.lt.s32.totalorder %s14, 5
    %p287 = pnand %p285, %p286
    %p288 = pneg %p287
    // Predicated region
    $region41: #{dsconv_forward.2} parent=5 // pred_check
      _
    $region42: #{dsconv_forward.2} parent=5 // pred_check_branch
      %290 = sbr.rel (%p287) target = $region44
    $region43: #{dsconv_forward.2} parent=5 // pred_region
      %s291 = ssub.s32 %s14, 1
      %s292 = smul.u32 8, %s24
      %p293 = scmp.lt.s32.totalorder %s23, 1
      %s294 = scalar_select %p293, %s23, 1
      %p295 = scmp.lt.s32.totalorder %s292, 23
      %s296 = scalar_select %p295, %s292, 23
      %s297 = smul.addr %s296, 3
      %s298 = smul.addr %s294, 72
      %s299 = sadd.s32 %s297, %s298
      %s300 = smul.addr %s299, 8
      %s301 = scalar_lea.vmem %s0, %s300
      %p302 = pneg %p54
      %p303 = pneg %p51
      %s304 = sadd.s32 %s24, 1
      %s305 = smul.u32 8, %s304
      %p306 = scmp.lt.s32.totalorder %s23, 1
      %s307 = scalar_select %p306, %s23, 1
      %p308 = scmp.lt.s32.totalorder %s305, 23
      %s309 = scalar_select %p308, %s305, 23
      %s310 = smul.addr %s309, 3
      %s311 = smul.addr %s307, 72
      %s312 = sadd.s32 %s310, %s311
      %s313 = smul.addr %s312, 8
      %s314 = scalar_lea.vmem %s1, %s313
      %p315 = pneg %p84
      %p316 = pneg %p81
      %p317 = pneg %p105
      %p318 = pneg %p102
      %p319 = pneg %p126
      %p320 = pneg %p123
      %p321 = pneg %p147
      %p322 = pneg %p144
      %p323 = pneg %p168
      %p324 = pneg %p165
      %p325 = pneg %p196
      %p326 = pneg %p193
      %s327 = smul.u32 8, %s24
      %p328 = scmp.lt.s32.totalorder %s23, 1
      %s329 = scalar_select %p328, %s23, 1
      %p330 = scmp.lt.s32.totalorder %s327, 15
      %s331 = scalar_select %p330, %s327, 15
      %s332 = smul.addr %s331, 2
      %s333 = smul.addr %s329, 32
      %s334 = sadd.s32 %s332, %s333
      %s335 = smul.addr %s334, 8
      %s336 = scalar_lea.vmem %s6, %s335
      %p337 = pneg %p224
      %p338 = pneg %p221
      %p339 = scmp.lt.s32.totalorder %s23, 1
      %s340 = scalar_select %p339, %s23, 1
      %p341 = scmp.lt.s32.totalorder %s24, 1
      %s342 = scalar_select %p341, %s24, 1
      %s343 = smul.addr %s340, 2
      %s344 = sadd.s32 %s342, %s343
      %s345 = smul.addr %s344, 2
      %s346 = scalar_lea.vmem %s7, %s345
      %s347 = smul.u32 8, %s24
      %p348 = scmp.lt.s32.totalorder %s23, 1
      %s349 = scalar_select %p348, %s23, 1
      %p350 = scmp.lt.s32.totalorder %s347, 23
      %s351 = scalar_select %p350, %s347, 23
      %s352 = smul.addr %s351, 3
      %s353 = smul.addr %s349, 72
      %s354 = sadd.s32 %s352, %s353
      %s355 = smul.addr %s354, 8
      %s356 = scalar_lea.vmem %s0, %s355
      %s357 = smul.u32 8, %s24
      %s358 = sadd.s32 %s24, 1
      %s359 = smul.u32 8, %s358
      %p360 = scmp.lt.s32.totalorder %s23, 1
      %s361 = scalar_select %p360, %s23, 1
      %p362 = scmp.lt.s32.totalorder %s359, 23
      %s363 = scalar_select %p362, %s359, 23
      %s364 = smul.addr %s363, 3
      %s365 = smul.addr %s361, 72
      %s366 = sadd.s32 %s364, %s365
      %s367 = smul.addr %s366, 8
      %s368 = scalar_lea.vmem %s1, %s367
      %s369 = sadd.s32 %s24, 1
      %s370 = smul.u32 8, %s369
      %s371 = smul.u32 8, %s24
      %p372 = scmp.lt.s32.totalorder %s23, 1
      %s373 = scalar_select %p372, %s23, 1
      %p374 = scmp.lt.s32.totalorder %s371, 15
      %s375 = scalar_select %p374, %s371, 15
      %s376 = smul.addr %s375, 2
      %s377 = smul.addr %s373, 32
      %s378 = sadd.s32 %s376, %s377
      %s379 = smul.addr %s378, 8
      %s380 = scalar_lea.vmem %s6, %s379
      %s381 = smul.u32 8, %s24
      %p382 = scmp.lt.s32.totalorder %s23, 1
      %s383 = scalar_select %p382, %s23, 1
      %p384 = scmp.lt.s32.totalorder %s24, 1
      %s385 = scalar_select %p384, %s24, 1
      %s386 = smul.addr %s383, 2
      %s387 = sadd.s32 %s385, %s386
      %s388 = smul.addr %s387, 2
      %s389 = scalar_lea.vmem %s7, %s388
      %v391 = vld [vmem:[%s356] sm:$0xff]
      %v392 = vld [vmem:[%s356 + $0x8] sm:$0xff]
      %v393 = vld [vmem:[%s356 + $0x10] sm:$0x3]
      %v394 = vld [vmem:[%s356 + $0x18] sm:$0xff]
      %v395 = vld [vmem:[%s356 + $0x20] sm:$0xff]
      %v396 = vld [vmem:[%s356 + $0x28] sm:$0x3]
      %v397 = vld [vmem:[%s356 + $0x30] sm:$0xff]
      %v398 = vld [vmem:[%s356 + $0x38] sm:$0xff]
      %v399 = vld [vmem:[%s356 + $0x40] sm:$0x3]
      %v400 = vld [vmem:[%s356 + $0x48] sm:$0xff]
      %v401 = vld [vmem:[%s356 + $0x50] sm:$0xff]
      %v402 = vld [vmem:[%s356 + $0x58] sm:$0x3]
      %v403 = vld [vmem:[%s356 + $0x60] sm:$0xff]
      %v404 = vld [vmem:[%s356 + $0x68] sm:$0xff]
      %v405 = vld [vmem:[%s356 + $0x70] sm:$0x3]
      %v406 = vld [vmem:[%s356 + $0x78] sm:$0xff]
      %v407 = vld [vmem:[%s356 + $0x80] sm:$0xff]
      %v408 = vld [vmem:[%s356 + $0x88] sm:$0x3]
      %v409 = vld [vmem:[%s356 + $0x90] sm:$0xff]
      %v410 = vld [vmem:[%s356 + $0x98] sm:$0xff]
      %v411 = vld [vmem:[%s356 + $0xa0] sm:$0x3]
      %v412 = vld [vmem:[%s356 + $0xa8] sm:$0xff]
      %v413 = vld [vmem:[%s356 + $0xb0] sm:$0xff]
      %v414 = vld [vmem:[%s356 + $0xb8] sm:$0x3]
      %v415 = vld [vmem:[%s368] sm:$0xff]
      %v416 = vld [vmem:[%s368 + $0x8] sm:$0xff]
      %v417 = vld [vmem:[%s368 + $0x10] sm:$0x3]
      %v418 = vld [vmem:[%s368 + $0x18] sm:$0xff]
      %v419 = vld [vmem:[%s368 + $0x20] sm:$0xff]
      %v420 = vld [vmem:[%s368 + $0x28] sm:$0x3]
      %v421 = vld [vmem:[%s2] sm:$0x7]
      %v422 = vld [vmem:[%s2 + $0x4] sm:$0x7]
      %v423 = vld [vmem:[%s2 + $0x8] sm:$0x7]
      %v424 = vlaneseq
      %v425 = vshrl.u32 %v424, 7
      %v426 = vsub.s32 0, %v425
      %v427 = vrot.slane %v421, %v426
      %v428 = vmul.f32 %v391, %v427
      %v429 = vmul.f32 %v392, %v427
      %v430 = vmul.f32 %v394, %v427
      %v431 = vmul.f32 %v395, %v427
      %v432 = vmul.f32 %v397, %v427
      %v433 = vmul.f32 %v398, %v427
      %v434 = vmul.f32 %v400, %v427
      %v435 = vmul.f32 %v401, %v427
      %v436 = vmul.f32 %v403, %v427
      %v437 = vmul.f32 %v404, %v427
      %v438 = vmul.f32 %v406, %v427
      %v439 = vmul.f32 %v407, %v427
      %v440 = vmul.f32 %v409, %v427
      %v441 = vmul.f32 %v410, %v427
      %v442 = vmul.f32 %v412, %v427
      %v443 = vmul.f32 %v413, %v427
      %v444 = vadd.f32 %v428, 0.0
      %v445 = vadd.f32 %v429, 0.0
      %v446 = vadd.f32 %v430, 0.0
      %v447 = vadd.f32 %v431, 0.0
      %v448 = vadd.f32 %v432, 0.0
      %v449 = vadd.f32 %v433, 0.0
      %v450 = vadd.f32 %v434, 0.0
      %v451 = vadd.f32 %v435, 0.0
      %v452 = vadd.f32 %v436, 0.0
      %v453 = vadd.f32 %v437, 0.0
      %v454 = vadd.f32 %v438, 0.0
      %v455 = vadd.f32 %v439, 0.0
      %v456 = vadd.f32 %v440, 0.0
      %v457 = vadd.f32 %v441, 0.0
      %v458 = vadd.f32 %v442, 0.0
      %v459 = vadd.f32 %v443, 0.0
      %v460 = vlaneseq
      %v461 = vshrl.u32 %v460, 7
      %v462 = vsub.s32 1, %v461
      %v463 = vrot.slane %v421, %v462
      %v464 = vmul.f32 %v391, %v463
      %v465 = vmul.f32 %v392, %v463
      %v466 = vmul.f32 %v393, %v463
      %v467 = vmul.f32 %v394, %v463
      %v468 = vmul.f32 %v395, %v463
      %v469 = vmul.f32 %v396, %v463
      %v470 = vmul.f32 %v397, %v463
      %v471 = vmul.f32 %v398, %v463
      %v472 = vmul.f32 %v399, %v463
      %v473 = vmul.f32 %v400, %v463
      %v474 = vmul.f32 %v401, %v463
      %v475 = vmul.f32 %v402, %v463
      %v476 = vmul.f32 %v403, %v463
      %v477 = vmul.f32 %v404, %v463
      %v478 = vmul.f32 %v405, %v463
      %v479 = vmul.f32 %v406, %v463
      %v480 = vmul.f32 %v407, %v463
      %v481 = vmul.f32 %v408, %v463
      %v482 = vmul.f32 %v409, %v463
      %v483 = vmul.f32 %v410, %v463
      %v484 = vmul.f32 %v411, %v463
      %v485 = vmul.f32 %v412, %v463
      %v486 = vmul.f32 %v413, %v463
      %v487 = vmul.f32 %v414, %v463
      %vm512 = vcmask 1046528
      %v513 = vrot.slane %v464, 1
      %v514 = vrot.slane %v465, 1
      %v515 = vsel %vm512, %v513, %v514
      %v516 = vrot.slane %v466, 1
      %v517 = vsel %vm512, %v514, %v516
      %v518 = vrot.slane %v467, 1
      %v519 = vrot.slane %v468, 1
      %v520 = vsel %vm512, %v518, %v519
      %v521 = vrot.slane %v469, 1
      %v522 = vsel %vm512, %v519, %v521
      %v523 = vrot.slane %v470, 1
      %v524 = vrot.slane %v471, 1
      %v525 = vsel %vm512, %v523, %v524
      %v526 = vrot.slane %v472, 1
      %v527 = vsel %vm512, %v524, %v526
      %v528 = vrot.slane %v473, 1
      %v529 = vrot.slane %v474, 1
      %v530 = vsel %vm512, %v528, %v529
      %v531 = vrot.slane %v475, 1
      %v532 = vsel %vm512, %v529, %v531
      %v533 = vrot.slane %v476, 1
      %v534 = vrot.slane %v477, 1
      %v535 = vsel %vm512, %v533, %v534
      %v536 = vrot.slane %v478, 1
      %v537 = vsel %vm512, %v534, %v536
      %v538 = vrot.slane %v479, 1
      %v539 = vrot.slane %v480, 1
      %v540 = vsel %vm512, %v538, %v539
      %v541 = vrot.slane %v481, 1
      %v542 = vsel %vm512, %v539, %v541
      %v543 = vrot.slane %v482, 1
      %v544 = vrot.slane %v483, 1
      %v545 = vsel %vm512, %v543, %v544
      %v546 = vrot.slane %v484, 1
      %v547 = vsel %vm512, %v544, %v546
      %v548 = vrot.slane %v485, 1
      %v549 = vrot.slane %v486, 1
      %v550 = vsel %vm512, %v548, %v549
      %v551 = vrot.slane %v487, 1
      %v552 = vsel %vm512, %v549, %v551
      %v569 = vadd.f32 %v444, %v515
      %v570 = vadd.f32 %v445, %v517
      %v571 = vadd.f32 %v446, %v520
      %v572 = vadd.f32 %v447, %v522
      %v573 = vadd.f32 %v448, %v525
      %v574 = vadd.f32 %v449, %v527
      %v575 = vadd.f32 %v450, %v530
      %v576 = vadd.f32 %v451, %v532
      %v577 = vadd.f32 %v452, %v535
      %v578 = vadd.f32 %v453, %v537
      %v579 = vadd.f32 %v454, %v540
      %v580 = vadd.f32 %v455, %v542
      %v581 = vadd.f32 %v456, %v545
      %v582 = vadd.f32 %v457, %v547
      %v583 = vadd.f32 %v458, %v550
      %v584 = vadd.f32 %v459, %v552
      %v585 = vlaneseq
      %v586 = vshrl.u32 %v585, 7
      %v587 = vsub.s32 2, %v586
      %v588 = vrot.slane %v421, %v587
      %v589 = vmul.f32 %v391, %v588
      %v590 = vmul.f32 %v392, %v588
      %v591 = vmul.f32 %v393, %v588
      %v592 = vmul.f32 %v394, %v588
      %v593 = vmul.f32 %v395, %v588
      %v594 = vmul.f32 %v396, %v588
      %v595 = vmul.f32 %v397, %v588
      %v596 = vmul.f32 %v398, %v588
      %v597 = vmul.f32 %v399, %v588
      %v598 = vmul.f32 %v400, %v588
      %v599 = vmul.f32 %v401, %v588
      %v600 = vmul.f32 %v402, %v588
      %v601 = vmul.f32 %v403, %v588
      %v602 = vmul.f32 %v404, %v588
      %v603 = vmul.f32 %v405, %v588
      %v604 = vmul.f32 %v406, %v588
      %v605 = vmul.f32 %v407, %v588
      %v606 = vmul.f32 %v408, %v588
      %v607 = vmul.f32 %v409, %v588
      %v608 = vmul.f32 %v410, %v588
      %v609 = vmul.f32 %v411, %v588
      %v610 = vmul.f32 %v412, %v588
      %v611 = vmul.f32 %v413, %v588
      %v612 = vmul.f32 %v414, %v588
      %vm637 = vcmask 1045504
      %v638 = vrot.slane %v589, 2
      %v639 = vrot.slane %v590, 2
      %v640 = vsel %vm637, %v638, %v639
      %v641 = vrot.slane %v591, 2
      %v642 = vsel %vm637, %v639, %v641
      %v643 = vrot.slane %v592, 2
      %v644 = vrot.slane %v593, 2
      %v645 = vsel %vm637, %v643, %v644
      %v646 = vrot.slane %v594, 2
      %v647 = vsel %vm637, %v644, %v646
      %v648 = vrot.slane %v595, 2
      %v649 = vrot.slane %v596, 2
      %v650 = vsel %vm637, %v648, %v649
      %v651 = vrot.slane %v597, 2
      %v652 = vsel %vm637, %v649, %v651
      %v653 = vrot.slane %v598, 2
      %v654 = vrot.slane %v599, 2
      %v655 = vsel %vm637, %v653, %v654
      %v656 = vrot.slane %v600, 2
      %v657 = vsel %vm637, %v654, %v656
      %v658 = vrot.slane %v601, 2
      %v659 = vrot.slane %v602, 2
      %v660 = vsel %vm637, %v658, %v659
      %v661 = vrot.slane %v603, 2
      %v662 = vsel %vm637, %v659, %v661
      %v663 = vrot.slane %v604, 2
      %v664 = vrot.slane %v605, 2
      %v665 = vsel %vm637, %v663, %v664
      %v666 = vrot.slane %v606, 2
      %v667 = vsel %vm637, %v664, %v666
      %v668 = vrot.slane %v607, 2
      %v669 = vrot.slane %v608, 2
      %v670 = vsel %vm637, %v668, %v669
      %v671 = vrot.slane %v609, 2
      %v672 = vsel %vm637, %v669, %v671
      %v673 = vrot.slane %v610, 2
      %v674 = vrot.slane %v611, 2
      %v675 = vsel %vm637, %v673, %v674
      %v676 = vrot.slane %v612, 2
      %v677 = vsel %vm637, %v674, %v676
      %v694 = vadd.f32 %v569, %v640
      %v695 = vadd.f32 %v570, %v642
      %v696 = vadd.f32 %v571, %v645
      %v697 = vadd.f32 %v572, %v647
      %v698 = vadd.f32 %v573, %v650
      %v699 = vadd.f32 %v574, %v652
      %v700 = vadd.f32 %v575, %v655
      %v701 = vadd.f32 %v576, %v657
      %v702 = vadd.f32 %v577, %v660
      %v703 = vadd.f32 %v578, %v662
      %v704 = vadd.f32 %v579, %v665
      %v705 = vadd.f32 %v580, %v667
      %v706 = vadd.f32 %v581, %v670
      %v707 = vadd.f32 %v582, %v672
      %v708 = vadd.f32 %v583, %v675
      %v709 = vadd.f32 %v584, %v677
      %v710 = vlaneseq
      %v711 = vshrl.u32 %v710, 7
      %v712 = vsub.s32 0, %v711
      %v713 = vrot.slane %v422, %v712
      %v714 = vmul.f32 %v394, %v713
      %v715 = vmul.f32 %v395, %v713
      %v716 = vmul.f32 %v397, %v713
      %v717 = vmul.f32 %v398, %v713
      %v718 = vmul.f32 %v400, %v713
      %v719 = vmul.f32 %v401, %v713
      %v720 = vmul.f32 %v403, %v713
      %v721 = vmul.f32 %v404, %v713
      %v722 = vmul.f32 %v406, %v713
      %v723 = vmul.f32 %v407, %v713
      %v724 = vmul.f32 %v409, %v713
      %v725 = vmul.f32 %v410, %v713
      %v726 = vmul.f32 %v412, %v713
      %v727 = vmul.f32 %v413, %v713
      %v728 = vmul.f32 %v415, %v713
      %v729 = vmul.f32 %v416, %v713
      %v730 = vadd.f32 %v694, %v714
      %v731 = vadd.f32 %v695, %v715
      %v732 = vadd.f32 %v696, %v716
      %v733 = vadd.f32 %v697, %v717
      %v734 = vadd.f32 %v698, %v718
      %v735 = vadd.f32 %v699, %v719
      %v736 = vadd.f32 %v700, %v720
      %v737 = vadd.f32 %v701, %v721
      %v738 = vadd.f32 %v702, %v722
      %v739 = vadd.f32 %v703, %v723
      %v740 = vadd.f32 %v704, %v724
      %v741 = vadd.f32 %v705, %v725
      %v742 = vadd.f32 %v706, %v726
      %v743 = vadd.f32 %v707, %v727
      %v744 = vadd.f32 %v708, %v728
      %v745 = vadd.f32 %v709, %v729
      %v746 = vlaneseq
      %v747 = vshrl.u32 %v746, 7
      %v748 = vsub.s32 1, %v747
      %v749 = vrot.slane %v422, %v748
      %v750 = vmul.f32 %v394, %v749
      %v751 = vmul.f32 %v395, %v749
      %v752 = vmul.f32 %v396, %v749
      %v753 = vmul.f32 %v397, %v749
      %v754 = vmul.f32 %v398, %v749
      %v755 = vmul.f32 %v399, %v749
      %v756 = vmul.f32 %v400, %v749
      %v757 = vmul.f32 %v401, %v749
      %v758 = vmul.f32 %v402, %v749
      %v759 = vmul.f32 %v403, %v749
      %v760 = vmul.f32 %v404, %v749
      %v761 = vmul.f32 %v405, %v749
      %v762 = vmul.f32 %v406, %v749
      %v763 = vmul.f32 %v407, %v749
      %v764 = vmul.f32 %v408, %v749
      %v765 = vmul.f32 %v409, %v749
      %v766 = vmul.f32 %v410, %v749
      %v767 = vmul.f32 %v411, %v749
      %v768 = vmul.f32 %v412, %v749
      %v769 = vmul.f32 %v413, %v749
      %v770 = vmul.f32 %v414, %v749
      %v771 = vmul.f32 %v415, %v749
      %v772 = vmul.f32 %v416, %v749
      %v773 = vmul.f32 %v417, %v749
      %v798 = vrot.slane %v750, 1
      %v799 = vrot.slane %v751, 1
      %v800 = vsel %vm512, %v798, %v799
      %v801 = vrot.slane %v752, 1
      %v802 = vsel %vm512, %v799, %v801
      %v803 = vrot.slane %v753, 1
      %v804 = vrot.slane %v754, 1
      %v805 = vsel %vm512, %v803, %v804
      %v806 = vrot.slane %v755, 1
      %v807 = vsel %vm512, %v804, %v806
      %v808 = vrot.slane %v756, 1
      %v809 = vrot.slane %v757, 1
      %v810 = vsel %vm512, %v808, %v809
      %v811 = vrot.slane %v758, 1
      %v812 = vsel %vm512, %v809, %v811
      %v813 = vrot.slane %v759, 1
      %v814 = vrot.slane %v760, 1
      %v815 = vsel %vm512, %v813, %v814
      %v816 = vrot.slane %v761, 1
      %v817 = vsel %vm512, %v814, %v816
      %v818 = vrot.slane %v762, 1
      %v819 = vrot.slane %v763, 1
      %v820 = vsel %vm512, %v818, %v819
      %v821 = vrot.slane %v764, 1
      %v822 = vsel %vm512, %v819, %v821
      %v823 = vrot.slane %v765, 1
      %v824 = vrot.slane %v766, 1
      %v825 = vsel %vm512, %v823, %v824
      %v826 = vrot.slane %v767, 1
      %v827 = vsel %vm512, %v824, %v826
      %v828 = vrot.slane %v768, 1
      %v829 = vrot.slane %v769, 1
      %v830 = vsel %vm512, %v828, %v829
      %v831 = vrot.slane %v770, 1
      %v832 = vsel %vm512, %v829, %v831
      %v833 = vrot.slane %v771, 1
      %v834 = vrot.slane %v772, 1
      %v835 = vsel %vm512, %v833, %v834
      %v836 = vrot.slane %v773, 1
      %v837 = vsel %vm512, %v834, %v836
      %v854 = vadd.f32 %v730, %v800
      %v855 = vadd.f32 %v731, %v802
      %v856 = vadd.f32 %v732, %v805
      %v857 = vadd.f32 %v733, %v807
      %v858 = vadd.f32 %v734, %v810
      %v859 = vadd.f32 %v735, %v812
      %v860 = vadd.f32 %v736, %v815
      %v861 = vadd.f32 %v737, %v817
      %v862 = vadd.f32 %v738, %v820
      %v863 = vadd.f32 %v739, %v822
      %v864 = vadd.f32 %v740, %v825
      %v865 = vadd.f32 %v741, %v827
      %v866 = vadd.f32 %v742, %v830
      %v867 = vadd.f32 %v743, %v832
      %v868 = vadd.f32 %v744, %v835
      %v869 = vadd.f32 %v745, %v837
      %v870 = vlaneseq
      %v871 = vshrl.u32 %v870, 7
      %v872 = vsub.s32 2, %v871
      %v873 = vrot.slane %v422, %v872
      %v874 = vmul.f32 %v394, %v873
      %v875 = vmul.f32 %v395, %v873
      %v876 = vmul.f32 %v396, %v873
      %v877 = vmul.f32 %v397, %v873
      %v878 = vmul.f32 %v398, %v873
      %v879 = vmul.f32 %v399, %v873
      %v880 = vmul.f32 %v400, %v873
      %v881 = vmul.f32 %v401, %v873
      %v882 = vmul.f32 %v402, %v873
      %v883 = vmul.f32 %v403, %v873
      %v884 = vmul.f32 %v404, %v873
      %v885 = vmul.f32 %v405, %v873
      %v886 = vmul.f32 %v406, %v873
      %v887 = vmul.f32 %v407, %v873
      %v888 = vmul.f32 %v408, %v873
      %v889 = vmul.f32 %v409, %v873
      %v890 = vmul.f32 %v410, %v873
      %v891 = vmul.f32 %v411, %v873
      %v892 = vmul.f32 %v412, %v873
      %v893 = vmul.f32 %v413, %v873
      %v894 = vmul.f32 %v414, %v873
      %v895 = vmul.f32 %v415, %v873
      %v896 = vmul.f32 %v416, %v873
      %v897 = vmul.f32 %v417, %v873
      %v922 = vrot.slane %v874, 2
      %v923 = vrot.slane %v875, 2
      %v924 = vsel %vm637, %v922, %v923
      %v925 = vrot.slane %v876, 2
      %v926 = vsel %vm637, %v923, %v925
      %v927 = vrot.slane %v877, 2
      %v928 = vrot.slane %v878, 2
      %v929 = vsel %vm637, %v927, %v928
      %v930 = vrot.slane %v879, 2
      %v931 = vsel %vm637, %v928, %v930
      %v932 = vrot.slane %v880, 2
      %v933 = vrot.slane %v881, 2
      %v934 = vsel %vm637, %v932, %v933
      %v935 = vrot.slane %v882, 2
      %v936 = vsel %vm637, %v933, %v935
      %v937 = vrot.slane %v883, 2
      %v938 = vrot.slane %v884, 2
      %v939 = vsel %vm637, %v937, %v938
      %v940 = vrot.slane %v885, 2
      %v941 = vsel %vm637, %v938, %v940
      %v942 = vrot.slane %v886, 2
      %v943 = vrot.slane %v887, 2
      %v944 = vsel %vm637, %v942, %v943
      %v945 = vrot.slane %v888, 2
      %v946 = vsel %vm637, %v943, %v945
      %v947 = vrot.slane %v889, 2
      %v948 = vrot.slane %v890, 2
      %v949 = vsel %vm637, %v947, %v948
      %v950 = vrot.slane %v891, 2
      %v951 = vsel %vm637, %v948, %v950
      %v952 = vrot.slane %v892, 2
      %v953 = vrot.slane %v893, 2
      %v954 = vsel %vm637, %v952, %v953
      %v955 = vrot.slane %v894, 2
      %v956 = vsel %vm637, %v953, %v955
      %v957 = vrot.slane %v895, 2
      %v958 = vrot.slane %v896, 2
      %v959 = vsel %vm637, %v957, %v958
      %v960 = vrot.slane %v897, 2
      %v961 = vsel %vm637, %v958, %v960
      %v978 = vadd.f32 %v854, %v924
      %v979 = vadd.f32 %v855, %v926
      %v980 = vadd.f32 %v856, %v929
      %v981 = vadd.f32 %v857, %v931
      %v982 = vadd.f32 %v858, %v934
      %v983 = vadd.f32 %v859, %v936
      %v984 = vadd.f32 %v860, %v939
      %v985 = vadd.f32 %v861, %v941
      %v986 = vadd.f32 %v862, %v944
      %v987 = vadd.f32 %v863, %v946
      %v988 = vadd.f32 %v864, %v949
      %v989 = vadd.f32 %v865, %v951
      %v990 = vadd.f32 %v866, %v954
      %v991 = vadd.f32 %v867, %v956
      %v992 = vadd.f32 %v868, %v959
      %v993 = vadd.f32 %v869, %v961
      %v994 = vlaneseq
      %v995 = vshrl.u32 %v994, 7
      %v996 = vsub.s32 0, %v995
      %v997 = vrot.slane %v423, %v996
      %v998 = vmul.f32 %v397, %v997
      %v999 = vmul.f32 %v398, %v997
      %v1000 = vmul.f32 %v400, %v997
      %v1001 = vmul.f32 %v401, %v997
      %v1002 = vmul.f32 %v403, %v997
      %v1003 = vmul.f32 %v404, %v997
      %v1004 = vmul.f32 %v406, %v997
      %v1005 = vmul.f32 %v407, %v997
      %v1006 = vmul.f32 %v409, %v997
      %v1007 = vmul.f32 %v410, %v997
      %v1008 = vmul.f32 %v412, %v997
      %v1009 = vmul.f32 %v413, %v997
      %v1010 = vmul.f32 %v415, %v997
      %v1011 = vmul.f32 %v416, %v997
      %v1012 = vmul.f32 %v418, %v997
      %v1013 = vmul.f32 %v419, %v997
      %v1014 = vadd.f32 %v978, %v998
      %v1015 = vadd.f32 %v979, %v999
      %v1016 = vadd.f32 %v980, %v1000
      %v1017 = vadd.f32 %v981, %v1001
      %v1018 = vadd.f32 %v982, %v1002
      %v1019 = vadd.f32 %v983, %v1003
      %v1020 = vadd.f32 %v984, %v1004
      %v1021 = vadd.f32 %v985, %v1005
      %v1022 = vadd.f32 %v986, %v1006
      %v1023 = vadd.f32 %v987, %v1007
      %v1024 = vadd.f32 %v988, %v1008
      %v1025 = vadd.f32 %v989, %v1009
      %v1026 = vadd.f32 %v990, %v1010
      %v1027 = vadd.f32 %v991, %v1011
      %v1028 = vadd.f32 %v992, %v1012
      %v1029 = vadd.f32 %v993, %v1013
      %v1030 = vlaneseq
      %v1031 = vshrl.u32 %v1030, 7
      %v1032 = vsub.s32 1, %v1031
      %v1033 = vrot.slane %v423, %v1032
      %v1034 = vmul.f32 %v397, %v1033
      %v1035 = vmul.f32 %v398, %v1033
      %v1036 = vmul.f32 %v399, %v1033
      %v1037 = vmul.f32 %v400, %v1033
      %v1038 = vmul.f32 %v401, %v1033
      %v1039 = vmul.f32 %v402, %v1033
      %v1040 = vmul.f32 %v403, %v1033
      %v1041 = vmul.f32 %v404, %v1033
      %v1042 = vmul.f32 %v405, %v1033
      %v1043 = vmul.f32 %v406, %v1033
      %v1044 = vmul.f32 %v407, %v1033
      %v1045 = vmul.f32 %v408, %v1033
      %v1046 = vmul.f32 %v409, %v1033
      %v1047 = vmul.f32 %v410, %v1033
      %v1048 = vmul.f32 %v411, %v1033
      %v1049 = vmul.f32 %v412, %v1033
      %v1050 = vmul.f32 %v413, %v1033
      %v1051 = vmul.f32 %v414, %v1033
      %v1052 = vmul.f32 %v415, %v1033
      %v1053 = vmul.f32 %v416, %v1033
      %v1054 = vmul.f32 %v417, %v1033
      %v1055 = vmul.f32 %v418, %v1033
      %v1056 = vmul.f32 %v419, %v1033
      %v1057 = vmul.f32 %v420, %v1033
      %v1082 = vrot.slane %v1034, 1
      %v1083 = vrot.slane %v1035, 1
      %v1084 = vsel %vm512, %v1082, %v1083
      %v1085 = vrot.slane %v1036, 1
      %v1086 = vsel %vm512, %v1083, %v1085
      %v1087 = vrot.slane %v1037, 1
      %v1088 = vrot.slane %v1038, 1
      %v1089 = vsel %vm512, %v1087, %v1088
      %v1090 = vrot.slane %v1039, 1
      %v1091 = vsel %vm512, %v1088, %v1090
      %v1092 = vrot.slane %v1040, 1
      %v1093 = vrot.slane %v1041, 1
      %v1094 = vsel %vm512, %v1092, %v1093
      %v1095 = vrot.slane %v1042, 1
      %v1096 = vsel %vm512, %v1093, %v1095
      %v1097 = vrot.slane %v1043, 1
      %v1098 = vrot.slane %v1044, 1
      %v1099 = vsel %vm512, %v1097, %v1098
      %v1100 = vrot.slane %v1045, 1
      %v1101 = vsel %vm512, %v1098, %v1100
      %v1102 = vrot.slane %v1046, 1
      %v1103 = vrot.slane %v1047, 1
      %v1104 = vsel %vm512, %v1102, %v1103
      %v1105 = vrot.slane %v1048, 1
      %v1106 = vsel %vm512, %v1103, %v1105
      %v1107 = vrot.slane %v1049, 1
      %v1108 = vrot.slane %v1050, 1
      %v1109 = vsel %vm512, %v1107, %v1108
      %v1110 = vrot.slane %v1051, 1
      %v1111 = vsel %vm512, %v1108, %v1110
      %v1112 = vrot.slane %v1052, 1
      %v1113 = vrot.slane %v1053, 1
      %v1114 = vsel %vm512, %v1112, %v1113
      %v1115 = vrot.slane %v1054, 1
      %v1116 = vsel %vm512, %v1113, %v1115
      %v1117 = vrot.slane %v1055, 1
      %v1118 = vrot.slane %v1056, 1
      %v1119 = vsel %vm512, %v1117, %v1118
      %v1120 = vrot.slane %v1057, 1
      %v1121 = vsel %vm512, %v1118, %v1120
      %v1138 = vadd.f32 %v1014, %v1084
      %v1139 = vadd.f32 %v1015, %v1086
      %v1140 = vadd.f32 %v1016, %v1089
      %v1141 = vadd.f32 %v1017, %v1091
      %v1142 = vadd.f32 %v1018, %v1094
      %v1143 = vadd.f32 %v1019, %v1096
      %v1144 = vadd.f32 %v1020, %v1099
      %v1145 = vadd.f32 %v1021, %v1101
      %v1146 = vadd.f32 %v1022, %v1104
      %v1147 = vadd.f32 %v1023, %v1106
      %v1148 = vadd.f32 %v1024, %v1109
      %v1149 = vadd.f32 %v1025, %v1111
      %v1150 = vadd.f32 %v1026, %v1114
      %v1151 = vadd.f32 %v1027, %v1116
      %v1152 = vadd.f32 %v1028, %v1119
      %v1153 = vadd.f32 %v1029, %v1121
      %v1154 = vlaneseq
      %v1155 = vshrl.u32 %v1154, 7
      %v1156 = vsub.s32 2, %v1155
      %v1157 = vrot.slane %v423, %v1156
      %v1158 = vmul.f32 %v397, %v1157
      %v1159 = vmul.f32 %v398, %v1157
      %v1160 = vmul.f32 %v399, %v1157
      %v1161 = vmul.f32 %v400, %v1157
      %v1162 = vmul.f32 %v401, %v1157
      %v1163 = vmul.f32 %v402, %v1157
      %v1164 = vmul.f32 %v403, %v1157
      %v1165 = vmul.f32 %v404, %v1157
      %v1166 = vmul.f32 %v405, %v1157
      %v1167 = vmul.f32 %v406, %v1157
      %v1168 = vmul.f32 %v407, %v1157
      %v1169 = vmul.f32 %v408, %v1157
      %v1170 = vmul.f32 %v409, %v1157
      %v1171 = vmul.f32 %v410, %v1157
      %v1172 = vmul.f32 %v411, %v1157
      %v1173 = vmul.f32 %v412, %v1157
      %v1174 = vmul.f32 %v413, %v1157
      %v1175 = vmul.f32 %v414, %v1157
      %v1176 = vmul.f32 %v415, %v1157
      %v1177 = vmul.f32 %v416, %v1157
      %v1178 = vmul.f32 %v417, %v1157
      %v1179 = vmul.f32 %v418, %v1157
      %v1180 = vmul.f32 %v419, %v1157
      %v1181 = vmul.f32 %v420, %v1157
      %v1206 = vrot.slane %v1158, 2
      %v1207 = vrot.slane %v1159, 2
      %v1208 = vsel %vm637, %v1206, %v1207
      %v1209 = vrot.slane %v1160, 2
      %v1210 = vsel %vm637, %v1207, %v1209
      %v1211 = vrot.slane %v1161, 2
      %v1212 = vrot.slane %v1162, 2
      %v1213 = vsel %vm637, %v1211, %v1212
      %v1214 = vrot.slane %v1163, 2
      %v1215 = vsel %vm637, %v1212, %v1214
      %v1216 = vrot.slane %v1164, 2
      %v1217 = vrot.slane %v1165, 2
      %v1218 = vsel %vm637, %v1216, %v1217
      %v1219 = vrot.slane %v1166, 2
      %v1220 = vsel %vm637, %v1217, %v1219
      %v1221 = vrot.slane %v1167, 2
      %v1222 = vrot.slane %v1168, 2
      %v1223 = vsel %vm637, %v1221, %v1222
      %v1224 = vrot.slane %v1169, 2
      %v1225 = vsel %vm637, %v1222, %v1224
      %v1226 = vrot.slane %v1170, 2
      %v1227 = vrot.slane %v1171, 2
      %v1228 = vsel %vm637, %v1226, %v1227
      %v1229 = vrot.slane %v1172, 2
      %v1230 = vsel %vm637, %v1227, %v1229
      %v1231 = vrot.slane %v1173, 2
      %v1232 = vrot.slane %v1174, 2
      %v1233 = vsel %vm637, %v1231, %v1232
      %v1234 = vrot.slane %v1175, 2
      %v1235 = vsel %vm637, %v1232, %v1234
      %v1236 = vrot.slane %v1176, 2
      %v1237 = vrot.slane %v1177, 2
      %v1238 = vsel %vm637, %v1236, %v1237
      %v1239 = vrot.slane %v1178, 2
      %v1240 = vsel %vm637, %v1237, %v1239
      %v1241 = vrot.slane %v1179, 2
      %v1242 = vrot.slane %v1180, 2
      %v1243 = vsel %vm637, %v1241, %v1242
      %v1244 = vrot.slane %v1181, 2
      %v1245 = vsel %vm637, %v1242, %v1244
      %v1262 = vadd.f32 %v1138, %v1208
      %v1263 = vadd.f32 %v1139, %v1210
      %v1264 = vadd.f32 %v1140, %v1213
      %v1265 = vadd.f32 %v1141, %v1215
      %v1266 = vadd.f32 %v1142, %v1218
      %v1267 = vadd.f32 %v1143, %v1220
      %v1268 = vadd.f32 %v1144, %v1223
      %v1269 = vadd.f32 %v1145, %v1225
      %v1270 = vadd.f32 %v1146, %v1228
      %v1271 = vadd.f32 %v1147, %v1230
      %v1272 = vadd.f32 %v1148, %v1233
      %v1273 = vadd.f32 %v1149, %v1235
      %v1274 = vadd.f32 %v1150, %v1238
      %v1275 = vadd.f32 %v1151, %v1240
      %v1276 = vadd.f32 %v1152, %v1243
      %v1277 = vadd.f32 %v1153, %v1245
      %v1278 = vld [vmem:[%s3] sm:$0x1]
      %v1280 = vlaneseq
      %v1281 = vshrl.u32 %v1280, 7
      %v1282 = vsub.s32 0, %v1281
      %v1283 = vrot.slane %v1278, %v1282
      %v1285 = vadd.f32 %v1262, %v1283
      %v1286 = vadd.f32 %v1263, %v1283
      %v1287 = vadd.f32 %v1264, %v1283
      %v1288 = vadd.f32 %v1265, %v1283
      %v1289 = vadd.f32 %v1266, %v1283
      %v1290 = vadd.f32 %v1267, %v1283
      %v1291 = vadd.f32 %v1268, %v1283
      %v1292 = vadd.f32 %v1269, %v1283
      %v1293 = vadd.f32 %v1270, %v1283
      %v1294 = vadd.f32 %v1271, %v1283
      %v1295 = vadd.f32 %v1272, %v1283
      %v1296 = vadd.f32 %v1273, %v1283
      %v1297 = vadd.f32 %v1274, %v1283
      %v1298 = vadd.f32 %v1275, %v1283
      %v1299 = vadd.f32 %v1276, %v1283
      %v1300 = vadd.f32 %v1277, %v1283
      %v1301 = vpack.c.bf16 %v1286, %v1285
      %v1302 = vpack.c.bf16 %v1288, %v1287
      %v1303 = vpack.c.bf16 %v1290, %v1289
      %v1304 = vpack.c.bf16 %v1292, %v1291
      %v1305 = vpack.c.bf16 %v1294, %v1293
      %v1306 = vpack.c.bf16 %v1296, %v1295
      %v1307 = vpack.c.bf16 %v1298, %v1297
      %v1308 = vpack.c.bf16 %v1300, %v1299
      %v1309 = vld [vmem:[%s4] sm:$0xf]
      %v1310 = vld [vmem:[%s4 + $0x4] sm:$0xf]
      %v1311 = vld [vmem:[%s4 + $0x8] sm:$0xf]
      %v1312 = vld [vmem:[%s4 + $0xc] sm:$0xf]
      %v1313 = vld [vmem:[%s4 + $0x10] sm:$0xf]
      %v1314 = vld [vmem:[%s4 + $0x14] sm:$0xf]
      %v1315 = vld [vmem:[%s4 + $0x18] sm:$0xf]
      %v1316 = vld [vmem:[%s4 + $0x1c] sm:$0xf]
      %v1317 = vld [vmem:[%s4 + $0x20] sm:$0xf]
      %v1318 = vld [vmem:[%s4 + $0x24] sm:$0xf]
      %v1319 = vld [vmem:[%s4 + $0x28] sm:$0xf]
      %v1320 = vld [vmem:[%s4 + $0x2c] sm:$0xf]
      %v1321 = vld [vmem:[%s4 + $0x30] sm:$0xf]
      %v1322 = vld [vmem:[%s4 + $0x34] sm:$0xf]
      %v1323 = vld [vmem:[%s4 + $0x38] sm:$0xf]
      %v1324 = vld [vmem:[%s4 + $0x3c] sm:$0xf]
      %v1325 = vld [vmem:[%s5] sm:$0x1]
      %v1327 = vlaneseq
      %v1328 = vshrl.u32 %v1327, 7
      %v1329 = vsub.s32 0, %v1328
      %v1330 = vrot.slane %v1325, %v1329
      %v1348 = vunpack.c.l.b16 %v1309
      %v1349 = vunpack.c.l.b16 %v1310
      %v1350 = vunpack.c.l.b16 %v1311
      %v1351 = vunpack.c.l.b16 %v1312
      %v1352 = vunpack.c.l.b16 %v1313
      %v1353 = vunpack.c.l.b16 %v1314
      %v1354 = vunpack.c.l.b16 %v1315
      %v1355 = vunpack.c.l.b16 %v1316
      %v1356 = vunpack.c.l.b16 %v1317
      %v1357 = vunpack.c.l.b16 %v1318
      %v1358 = vunpack.c.l.b16 %v1319
      %v1359 = vunpack.c.l.b16 %v1320
      %v1360 = vunpack.c.l.b16 %v1321
      %v1361 = vunpack.c.l.b16 %v1322
      %v1362 = vunpack.c.l.b16 %v1323
      %v1363 = vunpack.c.l.b16 %v1324
      %v1364 = vpack.c.b16 %v1349, %v1348
      %v1365 = vpack.c.b16 %v1351, %v1350
      %v1366 = vpack.c.b16 %v1353, %v1352
      %v1367 = vpack.c.b16 %v1355, %v1354
      %v1368 = vpack.c.b16 %v1357, %v1356
      %v1369 = vpack.c.b16 %v1359, %v1358
      %v1370 = vpack.c.b16 %v1361, %v1360
      %v1371 = vpack.c.b16 %v1363, %v1362
      %1380 = vmatprep.subr.bf16.mxu0 0
      %1381 = vmatpush1.bf16.msra.mxu0 %v1364
      %1382 = vmatprep.subr.bf16.mxu0 0
      %1383 = vmatpush1.bf16.msra.mxu0 %v1365
      %1384 = vmatprep.subr.bf16.mxu0 0
      %1385 = vmatpush1.bf16.msra.mxu0 %v1366
      %1386 = vmatprep.subr.bf16.mxu0 0
      %1387 = vmatpush1.bf16.msra.mxu0 %v1367
      %1388 = vmatprep.subr.bf16.mxu0 0
      %1389 = vmatpush1.bf16.msra.mxu0 %v1368
      %1390 = vmatprep.subr.bf16.mxu0 0
      %1391 = vmatpush1.bf16.msra.mxu0 %v1369
      %1392 = vmatprep.subr.bf16.mxu0 0
      %1393 = vmatpush1.bf16.msra.mxu0 %v1370
      %1394 = vmatprep.subr.bf16.mxu0 0
      %1395 = vmatpush1.bf16.msra.mxu0 %v1371
      %1396 = vmatprep.subr.bf16.mxu0 0
      %1397 = vmatpush1.bf16.msra.mxu0 0
      %1398 = vmatprep.subr.bf16.mxu0 0
      %1399 = vmatpush1.bf16.msra.mxu0 0
      %1400 = vmatprep.subr.bf16.mxu0 0
      %1401 = vmatpush1.bf16.msra.mxu0 0
      %1402 = vmatprep.subr.bf16.mxu0 0
      %1403 = vmatpush1.bf16.msra.mxu0 0
      %1404 = vmatprep.subr.bf16.mxu0 0
      %1405 = vmatpush1.bf16.msra.mxu0 0
      %1406 = vmatprep.subr.bf16.mxu0 0
      %1407 = vmatpush1.bf16.msra.mxu0 0
      %1408 = vmatprep.subr.bf16.mxu0 0
      %1409 = vmatpush1.bf16.msra.mxu0 0
      %1410 = vmatprep.subr.bf16.mxu0 0
      %1411 = vmatpush1.bf16.msra.mxu0 0
      %1412 = vmatprep.mubr.bf16.mxu0 0
      %1413 = vmatmul.mubr.bf16.gmra.mrb[0].mxu0 %v1301
      %v1414 = vpop.f32.mrb[0].mxu0
      %v1415 = vadd.f32 %v1330, %v1414
      %v1416 = vpop.f32.mrb[0].mxu0
      %v1417 = vpop.f32.mrb[0].mxu0
      %v1418 = vadd.f32 %v1330, %v1417
      %v1419 = vpop.f32.mrb[0].mxu0
      %1420 = vmatprep.mubr.bf16.mxu0 0
      %1421 = vmatmul.mubr.bf16.gmra.mrb[0].mxu0 %v1302
      %v1422 = vpop.f32.mrb[0].mxu0
      %v1423 = vadd.f32 %v1330, %v1422
      %v1424 = vpop.f32.mrb[0].mxu0
      %v1425 = vpop.f32.mrb[0].mxu0
      %v1426 = vadd.f32 %v1330, %v1425
      %v1427 = vpop.f32.mrb[0].mxu0
      %1428 = vmatprep.mubr.bf16.mxu0 0
      %1429 = vmatmul.mubr.bf16.gmra.mrb[0].mxu0 %v1303
      %v1430 = vpop.f32.mrb[0].mxu0
      %v1431 = vadd.f32 %v1330, %v1430
      %v1432 = vpop.f32.mrb[0].mxu0
      %v1433 = vpop.f32.mrb[0].mxu0
      %v1434 = vadd.f32 %v1330, %v1433
      %v1435 = vpop.f32.mrb[0].mxu0
      %1436 = vmatprep.mubr.bf16.mxu0 0
      %1437 = vmatmul.mubr.bf16.gmra.mrb[0].mxu0 %v1304
      %v1438 = vpop.f32.mrb[0].mxu0
      %v1439 = vadd.f32 %v1330, %v1438
      %v1440 = vpop.f32.mrb[0].mxu0
      %v1441 = vpop.f32.mrb[0].mxu0
      %v1442 = vadd.f32 %v1330, %v1441
      %v1443 = vpop.f32.mrb[0].mxu0
      %1444 = vmatprep.mubr.bf16.mxu0 0
      %1445 = vmatmul.mubr.bf16.gmra.mrb[0].mxu0 %v1305
      %v1446 = vpop.f32.mrb[0].mxu0
      %v1447 = vadd.f32 %v1330, %v1446
      %v1448 = vpop.f32.mrb[0].mxu0
      %v1449 = vpop.f32.mrb[0].mxu0
      %v1450 = vadd.f32 %v1330, %v1449
      %v1451 = vpop.f32.mrb[0].mxu0
      %1452 = vmatprep.mubr.bf16.mxu0 0
      %1453 = vmatmul.mubr.bf16.gmra.mrb[0].mxu0 %v1306
      %v1454 = vpop.f32.mrb[0].mxu0
      %v1455 = vadd.f32 %v1330, %v1454
      %v1456 = vpop.f32.mrb[0].mxu0
      %v1457 = vpop.f32.mrb[0].mxu0
      %v1458 = vadd.f32 %v1330, %v1457
      %v1459 = vpop.f32.mrb[0].mxu0
      %1460 = vmatprep.mubr.bf16.mxu0 0
      %1461 = vmatmul.mubr.bf16.gmra.mrb[0].mxu0 %v1307
      %v1462 = vpop.f32.mrb[0].mxu0
      %v1463 = vadd.f32 %v1330, %v1462
      %v1464 = vpop.f32.mrb[0].mxu0
      %v1465 = vpop.f32.mrb[0].mxu0
      %v1466 = vadd.f32 %v1330, %v1465
      %v1467 = vpop.f32.mrb[0].mxu0
      %1468 = vmatprep.mubr.bf16.mxu0 0
      %1469 = vmatmul.mubr.bf16.gmra.mrb[0].mxu0 %v1308
      %v1470 = vpop.f32.mrb[0].mxu0
      %v1471 = vadd.f32 %v1330, %v1470
      %v1472 = vpop.f32.mrb[0].mxu0
      %v1473 = vpop.f32.mrb[0].mxu0
      %v1474 = vadd.f32 %v1330, %v1473
      %v1475 = vpop.f32.mrb[0].mxu0
      %1476 = vdwg.mxu0
      %1477 = vst [vmem:[%s380] sm:$0xff] %v1415
      %1478 = vst [vmem:[%s380 + $0x8] sm:$0xff] %v1418
      %1479 = vst [vmem:[%s380 + $0x10] sm:$0xff] %v1423
      %1480 = vst [vmem:[%s380 + $0x18] sm:$0xff] %v1426
      %1481 = vst [vmem:[%s380 + $0x20] sm:$0xff] %v1431
      %1482 = vst [vmem:[%s380 + $0x28] sm:$0xff] %v1434
      %1483 = vst [vmem:[%s380 + $0x30] sm:$0xff] %v1439
      %1484 = vst [vmem:[%s380 + $0x38] sm:$0xff] %v1442
      %1485 = vst [vmem:[%s380 + $0x40] sm:$0xff] %v1447
      %1486 = vst [vmem:[%s380 + $0x48] sm:$0xff] %v1450
      %1487 = vst [vmem:[%s380 + $0x50] sm:$0xff] %v1455
      %1488 = vst [vmem:[%s380 + $0x58] sm:$0xff] %v1458
      %1489 = vst [vmem:[%s380 + $0x60] sm:$0xff] %v1463
      %1490 = vst [vmem:[%s380 + $0x68] sm:$0xff] %v1466
      %1491 = vst [vmem:[%s380 + $0x70] sm:$0xff] %v1471
      %1492 = vst [vmem:[%s380 + $0x78] sm:$0xff] %v1474
      %v1493 = vadd.f32 %v1415, %v1418
      %v1494 = vadd.f32 %v1493, %v1423
      %v1495 = vadd.f32 %v1494, %v1426
      %v1496 = vadd.f32 %v1495, %v1431
      %v1497 = vadd.f32 %v1496, %v1434
      %v1498 = vadd.f32 %v1497, %v1439
      %v1499 = vadd.f32 %v1498, %v1442
      %v1500 = vadd.f32 %v1499, %v1447
      %v1501 = vadd.f32 %v1500, %v1450
      %v1502 = vadd.f32 %v1501, %v1455
      %v1503 = vadd.f32 %v1502, %v1458
      %v1504 = vadd.f32 %v1503, %v1463
      %v1505 = vadd.f32 %v1504, %v1466
      %v1506 = vadd.f32 %v1505, %v1471
      %v1507 = vadd.f32 %v1506, %v1474
      %v1508 = vrot.slane %v1507, 4
      %v1509 = vadd.f32 %v1507, %v1508
      %v1510 = vrot.slane %v1509, 2
      %v1511 = vadd.f32 %v1509, %v1510
      %v1512 = vrot.slane %v1511, 1
      %v1513 = vadd.f32 %v1511, %v1512
      %v1514 = vmul.f32 %v1415, %v1415
      %v1515 = vmul.f32 %v1418, %v1418
      %v1516 = vmul.f32 %v1423, %v1423
      %v1517 = vmul.f32 %v1426, %v1426
      %v1518 = vmul.f32 %v1431, %v1431
      %v1519 = vmul.f32 %v1434, %v1434
      %v1520 = vmul.f32 %v1439, %v1439
      %v1521 = vmul.f32 %v1442, %v1442
      %v1522 = vmul.f32 %v1447, %v1447
      %v1523 = vmul.f32 %v1450, %v1450
      %v1524 = vmul.f32 %v1455, %v1455
      %v1525 = vmul.f32 %v1458, %v1458
      %v1526 = vmul.f32 %v1463, %v1463
      %v1527 = vmul.f32 %v1466, %v1466
      %v1528 = vmul.f32 %v1471, %v1471
      %v1529 = vmul.f32 %v1474, %v1474
      %v1530 = vadd.f32 %v1514, %v1515
      %v1531 = vadd.f32 %v1530, %v1516
      %v1532 = vadd.f32 %v1531, %v1517
      %v1533 = vadd.f32 %v1532, %v1518
      %v1534 = vadd.f32 %v1533, %v1519
      %v1535 = vadd.f32 %v1534, %v1520
      %v1536 = vadd.f32 %v1535, %v1521
      %v1537 = vadd.f32 %v1536, %v1522
      %v1538 = vadd.f32 %v1537, %v1523
      %v1539 = vadd.f32 %v1538, %v1524
      %v1540 = vadd.f32 %v1539, %v1525
      %v1541 = vadd.f32 %v1540, %v1526
      %v1542 = vadd.f32 %v1541, %v1527
      %v1543 = vadd.f32 %v1542, %v1528
      %v1544 = vadd.f32 %v1543, %v1529
      %v1545 = vrot.slane %v1544, 4
      %v1546 = vadd.f32 %v1544, %v1545
      %v1547 = vrot.slane %v1546, 2
      %v1548 = vadd.f32 %v1546, %v1547
      %v1549 = vrot.slane %v1548, 1
      %v1550 = vadd.f32 %v1548, %v1549
      %vm1551 = vcmask 1040384
      %v1552 = vsel %vm1551, %v1513, %v1550
      %1553 = vst [vmem:[%s389] sm:$0x3] %v1552
      %s1554 = smul.u32 8, %s24
      %p1555 = scmp.lt.s32.totalorder %s23, 1
      %s1556 = scalar_select %p1555, %s23, 1
      %p1557 = scmp.lt.s32.totalorder %s1554, 15
      %s1558 = scalar_select %p1557, %s1554, 15
      %s1559 = smul.addr %s1558, 2
      %s1560 = smul.addr %s1556, 32
      %s1561 = sadd.s32 %s1559, %s1560
      %s1562 = smul.addr %s1561, 8
      %s1563 = scalar_lea.vmem %s6, %s1562
      %p1564 = scmp.lt.s32.totalorder %s23, 1
      %s1565 = scalar_select %p1564, %s23, 1
      %p1566 = scmp.lt.s32.totalorder %s24, 1
      %s1567 = scalar_select %p1566, %s24, 1
      %s1568 = smul.addr %s1565, 2
      %s1569 = sadd.s32 %s1567, %s1568
      %s1570 = smul.addr %s1569, 2
      %s1571 = scalar_lea.vmem %s7, %s1570
      // Predicated region
      $region45: #{dsconv_forward.2} parent=43 // pred_check
        %p1572 = pneg %p193
      $region46: #{dsconv_forward.2} parent=43 // pred_check_branch
        %1574 = sbr.rel (%p1572) target = $region48
      $region47: #{dsconv_forward.2} parent=43 // pred_region
        %s1575 = smul.u32 8, %s24
      $region48: #{dsconv_forward.2} parent=43 // pred_fallthru
        _
      // Predicated region
      $region49: #{dsconv_forward.2} parent=43 // pred_check
        %p1576 = pneg %p221
      $region50: #{dsconv_forward.2} parent=43 // pred_check_branch
        %1578 = sbr.rel (%p1576) target = $region52
      $region51: #{dsconv_forward.2} parent=43 // pred_region
        _
      $region52: #{dsconv_forward.2} parent=43 // pred_fallthru
        _
    $region44: #{dsconv_forward.2} parent=5 // pred_fallthru
      _
    %p1579 = scmp.le.s32.totalorder 2, %s14
    // Predicated region
    $region53: #{dsconv_forward.2} parent=5 // pred_check
      %p1580 = pneg %p1579
    $region54: #{dsconv_forward.2} parent=5 // pred_check_branch
      %1582 = sbr.rel (%p1580) target = $region56
    $region55: #{dsconv_forward.2} parent=5 // pred_region
      %s1583 = ssub.s32 %s14, 2
      // Predicated region
      $region57: #{dsconv_forward.2} parent=55 // pred_check
        %p1584 = pneg %p199
      $region58: #{dsconv_forward.2} parent=55 // pred_check_branch
        %1586 = sbr.rel (%p1584) target = $region60
      $region59: #{dsconv_forward.2} parent=55 // pred_region
        %s1587 = smul.u32 8, %s26
        %p1588 = scmp.lt.s32.totalorder %s25, 1
        %s1589 = scalar_select %p1588, %s25, 1
        %p1590 = scmp.lt.s32.totalorder %s1587, 15
        %s1591 = scalar_select %p1590, %s1587, 15
        %s1592 = smul.addr %s1591, 2
        %s1593 = smul.addr %s1589, 32
        %s1594 = sadd.s32 %s1592, %s1593
        %s1595 = smul.addr %s1594, 8
        %s1596 = scalar_lea.vmem %s6, %s1595
      $region60: #{dsconv_forward.2} parent=55 // pred_fallthru
        _
      // Predicated region
      $region61: #{dsconv_forward.2} parent=55 // pred_check
        %p1597 = pneg %p227
      $region62: #{dsconv_forward.2} parent=55 // pred_check_branch
        %1599 = sbr.rel (%p1597) target = $region64
      $region63: #{dsconv_forward.2} parent=55 // pred_region
        %p1600 = scmp.lt.s32.totalorder %s25, 1
        %s1601 = scalar_select %p1600, %s25, 1
        %p1602 = scmp.lt.s32.totalorder %s26, 1
        %s1603 = scalar_select %p1602, %s26, 1
        %s1604 = smul.addr %s1601, 2
        %s1605 = sadd.s32 %s1603, %s1604
        %s1606 = smul.addr %s1605, 2
        %s1607 = scalar_lea.vmem %s7, %s1606
      $region64: #{dsconv_forward.2} parent=55 // pred_fallthru
        _
    $region56: #{dsconv_forward.2} parent=5 // pred_fallthru
      _
  $region6: #{dsconv_forward.2} parent=0 // loop_footer
    %s18 = sadd.s32 1, %s14
  $region7: #{dsconv_forward.2} parent=0 // loop_footer_branch
    %13 = sbr.rel target = $region3
  $region8: #{dsconv_forward.2} parent=0 // loop_exit
    _

</llo_original>
